<compile_context>
chip_gen: v7x
topology: tpu7x:2x2x1
jax: 0.10.0
libtpu: 0.0.40
codegen_flags: <defaults>
</compile_context>

<pallas_src>
import functools

import jax
import jax.numpy as jnp
from jax import lax
from jax.experimental import pallas as pl
from jax.experimental.pallas import tpu as pltpu


# ----------------------------------------------------------------------------
# Fused kernel:  Haar(2x2,s=2)+1x1conv+BN+ReLU  ->  (DW3x3+PW+BN+ReLU) x 2
# ----------------------------------------------------------------------------
def down_fused_kernel(s2d_ref, w1_ref, b1_ref, dw1_ref, pw1_ref, b2_ref,
                      dw2_ref, pw2t_ref, b3_ref, o_ref, pad_ref,
                      *, h2, w2, c4in, c):
    s = h2 * w2

    # ---- Stage 1: Haar downsample + 1x1 conv + BN + ReLU --------------------
    # Haar transform and BN1 scale are pre-folded into w1; the four 2x2 phases
    # sit on the lane axis of the space-to-depth input, so this is one dot.
    x = s2d_ref[0].reshape(s, c4in)                       # (H2*W2, 4*Cin)
    y = jnp.dot(x, w1_ref[...], preferred_element_type=jnp.float32)
    y = jnp.maximum(y + b1_ref[...], 0.0)                 # (H2*W2, C)

    # ---- DoubleConv block 1: depthwise 3x3 (pad=1) + pointwise + BN + ReLU --
    pad_ref[...] = jnp.zeros_like(pad_ref)                # halo ring stays zero
    pad_ref[1:h2 + 1, 1:w2 + 1, :] = y.reshape(h2, w2, c)
    xp = pad_ref[...]                                     # (H2+2, W2+2, C)
    wdw = dw1_ref[...]                                    # taps loaded once
    acc = jnp.zeros((h2, w2, c), jnp.float32)
    for dh in range(3):
        for dw in range(3):
            acc = acc + xp[dh:dh + h2, dw:dw + w2, :] * wdw[dh, dw, :]
    y = jnp.dot(acc.reshape(s, c), pw1_ref[...],
                preferred_element_type=jnp.float32)
    y = jnp.maximum(y + b2_ref[...], 0.0)                 # (H2*W2, C)

    # ---- DoubleConv block 2: depthwise 3x3 + pointwise + BN + ReLU ----------
    pad_ref[1:h2 + 1, 1:w2 + 1, :] = y.reshape(h2, w2, c)
    xp = pad_ref[...]
    wdw = dw2_ref[...]
    acc = jnp.zeros((h2, w2, c), jnp.float32)
    for dh in range(3):
        for dw in range(3):
            acc = acc + xp[dh:dh + h2, dw:dw + w2, :] * wdw[dh, dw, :]
    # Transposed pointwise -> (C, H2*W2): spatial on the lane axis, so the BN /
    # ReLU / store are lane-dense and the result is already channel-major.
    z = jnp.dot(pw2t_ref[...], acc.reshape(s, c).T,
                preferred_element_type=jnp.float32)
    z = jnp.maximum(z + b3_ref[...], 0.0)                 # (C, H2*W2)
    o_ref[...] = z.reshape(1, c, s)


# ----------------------------------------------------------------------------
# Host-side parameter folding (Haar + eval-mode BatchNorm into conv weights)
# ----------------------------------------------------------------------------
def _bn_scale_shift(gamma, beta, mean=0.0, var=1.0, eps=1e-5):
    scale = gamma / jnp.sqrt(var + eps)
    return scale, beta - mean * scale


def fold_params(p):
    c4, cout = p["w1"].shape
    cin = c4 // 4

    s1, h1 = _bn_scale_shift(p["bn1_gamma"], p["bn1_beta"])
    s2, h2 = _bn_scale_shift(p["bn2_gamma"], p["bn2_beta"])
    s3, h3 = _bn_scale_shift(p["bn3_gamma"], p["bn3_beta"])

    # Haar analysis matrix: rows = bands [LL, HL, LH, HH] (concat order of the
    # reference / pytorch_wavelets convention used before), cols = 2x2 phases
    # ordered [(0,0), (0,1), (1,0), (1,1)].
    m = 0.5 * jnp.array([[1., 1., 1., 1.],
                         [1., 1., -1., -1.],
                         [1., -1., 1., -1.],
                         [1., -1., -1., 1.]], jnp.float32)
    w1 = p["w1"].reshape(4, cin, cout)                    # (band, cin, cout)
    w1f = jnp.einsum("kp,kco->pco", m, w1).reshape(4 * cin, cout)

    return {
        "w1f": w1f * s1[None, :],                         # Haar + BN1 scale folded
        "b1f": (p["b1"] * s1 + h1).reshape(1, cout),      # conv bias + BN1 shift
        "dw1": p["dw1_w"],
        "pw1f": p["pw1_w"] * s2[None, :],                 # BN2 scale folded
        "b2f": h2.reshape(1, cout),
        "dw2": p["dw2_w"],
        "pw2t": (p["pw2_w"] * s3[None, :]).T,             # BN3 folded, pre-transposed
        "b3f": h3.reshape(cout, 1),
    }


# ----------------------------------------------------------------------------
# Wrapper
# ----------------------------------------------------------------------------
def down_forward(x_nchw, fp):
    B, cin, H, W = x_nchw.shape
    h2, w2 = H // 2, W // 2
    c = fp["w1f"].shape[1]
    s = h2 * w2

    # Space-to-depth: NCHW -> (B, H2, W2, 4*Cin); phases ordered
    # [(0,0),(0,1),(1,0),(1,1)] x Cin on the lane axis, matching fold_params.
    # One transpose (the NCHW->channels-last move we need anyway); x crosses
    # HBM exactly once outside the kernel.
    s2d = x_nchw.reshape(B, cin, h2, 2, w2, 2)
    s2d = jnp.transpose(s2d, (0, 2, 4, 3, 5, 1)).reshape(B, h2, w2, 4 * cin)

    kernel = functools.partial(down_fused_kernel, h2=h2, w2=w2,
                               c4in=4 * cin, c=c)

    def full(a):
        nd = a.ndim
        return pl.BlockSpec(a.shape, lambda b, _nd=nd: (0,) * _nd)

    flops = 2 * B * s * (4 * cin * c + 2 * (9 * c + c * c))
    bytes_accessed = 4 * (s2d.size + B * c * s + sum(
        fp[k].size for k in ("w1f", "b1f", "dw1", "pw1f", "b2f",
                             "dw2", "pw2t", "b3f")))

    out = pl.pallas_call(
        kernel,
        out_shape=jax.ShapeDtypeStruct((B, c, s), jnp.float32),
        grid=(B,),
        in_specs=[pl.BlockSpec((1, h2, w2, 4 * cin), lambda b: (b, 0, 0, 0)),
                  full(fp["w1f"]), full(fp["b1f"]), full(fp["dw1"]),
                  full(fp["pw1f"]), full(fp["b2f"]), full(fp["dw2"]),
                  full(fp["pw2t"]), full(fp["b3f"])],
        out_specs=pl.BlockSpec((1, c, s), lambda b: (b, 0, 0)),
        scratch_shapes=[pltpu.VMEM((h2 + 2, w2 + 2, c), jnp.float32)],
        compiler_params=pltpu.CompilerParams(
            dimension_semantics=("parallel",)),
        cost_estimate=pl.CostEstimate(flops=flops, transcendentals=0,
                                      bytes_accessed=bytes_accessed),
    )(s2d, fp["w1f"], fp["b1f"], fp["dw1"], fp["pw1f"], fp["b2f"],
      fp["dw2"], fp["pw2t"], fp["b3f"])

    return out.reshape(B, c, h2, w2)                      # already NCHW


# ----------------------------------------------------------------------------
# Pure-JAX reference (NCHW, mirrors the PyTorch ops, raw / un-folded params)
# ----------------------------------------------------------------------------
def down_reference(x, p):
    a = x[:, :, 0::2, 0::2]
    b = x[:, :, 0::2, 1::2]
    c = x[:, :, 1::2, 0::2]
    d = x[:, :, 1::2, 1::2]
    ll = (a + b + c + d) * 0.5
    hl = (a + b - c - d) * 0.5
    lh = (a - b + c - d) * 0.5
    hh = (a - b - c + d) * 0.5
    feat = jnp.concatenate([ll, hl, lh, hh], axis=1)       # (B, 4C, H/2, W/2)

    dn = ("NCHW", "OIHW", "NCHW")
    w1_t = p["w1"].T[:, :, None, None]                     # (Cout, 4C, 1, 1)
    y = lax.conv_general_dilated(feat, w1_t, (1, 1), "VALID",
                                 dimension_numbers=dn)
    y = y + p["b1"].reshape(1, -1, 1, 1)
    sc1, sh1 = _bn_scale_shift(p["bn1_gamma"], p["bn1_beta"])
    y = jnp.maximum(y * sc1.reshape(1, -1, 1, 1) + sh1.reshape(1, -1, 1, 1), 0.0)

    def dw_pw(y, w_dw, w_pw, gamma, beta):
        Cc = y.shape[1]
        wdw_t = jnp.transpose(w_dw, (2, 0, 1))[:, None, :, :]   # (C,1,3,3)
        y = lax.conv_general_dilated(y, wdw_t, (1, 1), ((1, 1), (1, 1)),
                                     dimension_numbers=dn, feature_group_count=Cc)
        wpw_t = w_pw.T[:, :, None, None]                         # (Cout, C, 1, 1)
        y = lax.conv_general_dilated(y, wpw_t, (1, 1), "VALID",
                                     dimension_numbers=dn)
        sc, sh = _bn_scale_shift(gamma, beta)
        return jnp.maximum(y * sc.reshape(1, -1, 1, 1) + sh.reshape(1, -1, 1, 1), 0.0)

    y = dw_pw(y, p["dw1_w"], p["pw1_w"], p["bn2_gamma"], p["bn2_beta"])
    y = dw_pw(y, p["dw2_w"], p["pw2_w"], p["bn3_gamma"], p["bn3_beta"])
    return y


# ----------------------------------------------------------------------------
# Deterministic parameter init (shapes from the module's __init__)
# ----------------------------------------------------------------------------
def init_params(key, in_ch, out_ch):
    ks = jax.random.split(key, 12)
    return {
        # Down_wt: Conv2d(4*in_ch, out_ch, 1): weight (4*in_ch, out_ch), bias (out_ch,)
        "w1": 0.2 * jax.random.normal(ks[0], (4 * in_ch, out_ch), jnp.float32),
        "b1": 0.1 * jax.random.normal(ks[1], (out_ch,), jnp.float32),
        "bn1_gamma": 1.0 + 0.1 * jax.random.normal(ks[2], (out_ch,), jnp.float32),
        "bn1_beta": 0.1 * jax.random.normal(ks[3], (out_ch,), jnp.float32),
        # DoubleConv block 1: depthwise (3,3,C), pointwise (C,C), bias=False
        "dw1_w": 0.2 * jax.random.normal(ks[4], (3, 3, out_ch), jnp.float32),
        "pw1_w": 0.2 * jax.random.normal(ks[5], (out_ch, out_ch), jnp.float32),
        "bn2_gamma": 1.0 + 0.1 * jax.random.normal(ks[6], (out_ch,), jnp.float32),
        "bn2_beta": 0.1 * jax.random.normal(ks[7], (out_ch,), jnp.float32),
        # DoubleConv block 2
        "dw2_w": 0.2 * jax.random.normal(ks[8], (3, 3, out_ch), jnp.float32),
        "pw2_w": 0.2 * jax.random.normal(ks[9], (out_ch, out_ch), jnp.float32),
        "bn3_gamma": 1.0 + 0.1 * jax.random.normal(ks[10], (out_ch,), jnp.float32),
        "bn3_beta": 0.1 * jax.random.normal(ks[11], (out_ch,), jnp.float32),
    }


if __name__ == "__main__":
    in_channels, out_channels = 4, 8
    B, H, W = 2, 16, 16

    key = jax.random.PRNGKey(0)
    kx, kp = jax.random.split(key)
    x = jax.random.normal(kx, (B, in_channels, H, W), jnp.float32)
    params = init_params(kp, in_channels, out_channels)

    fp = fold_params(params)                      # one-time host-side weight fold
    out = jax.jit(down_forward)(x, fp)
    out = jax.block_until_ready(out)
    assert out.shape == (B, out_channels, H // 2, W // 2), out.shape

    ref = jax.block_until_ready(down_reference(x, params))
    assert jnp.allclose(out, ref, atol=1e-4, rtol=1e-4), float(
        jnp.max(jnp.abs(out - ref)))

    print("KERNEL_OK")
</pallas_src>

<mosaic_0001>
module attributes {stable_mosaic.version = 11 : i64} {
  func.func @down_fused_kernel(%arg0: i32, %arg1: memref<1x8x8x16xf32, #tpu.memory_space<vmem>>, %arg2: memref<16x8xf32, #tpu.memory_space<vmem>>, %arg3: memref<1x8xf32, #tpu.memory_space<vmem>>, %arg4: memref<3x3x8xf32, #tpu.memory_space<vmem>>, %arg5: memref<8x8xf32, #tpu.memory_space<vmem>>, %arg6: memref<1x8xf32, #tpu.memory_space<vmem>>, %arg7: memref<3x3x8xf32, #tpu.memory_space<vmem>>, %arg8: memref<8x8xf32, #tpu.memory_space<vmem>>, %arg9: memref<8x1xf32, #tpu.memory_space<vmem>>, %arg10: memref<1x8x64xf32, #tpu.memory_space<vmem>>, %arg11: memref<10x10x8xf32, #tpu.memory_space<vmem>>) attributes {dimension_semantics = [#tpu.dimension_semantics<parallel>], iteration_bounds = array<i64: 2>, scalar_prefetch = 0 : i64, scratch_operands = 1 : i64, tpu.core_type = #tpu.core_type<tc>, window_params = [{transform_indices = @transform_0, window_bounds = array<i64: 1, 8, 8, 16>}, {pipeline_mode = #tpu.pipeline_mode<synchronous>, transform_indices = @transform_1, window_bounds = array<i64: 16, 8>}, {pipeline_mode = #tpu.pipeline_mode<synchronous>, transform_indices = @transform_2, window_bounds = array<i64: 1, 8>}, {pipeline_mode = #tpu.pipeline_mode<synchronous>, transform_indices = @transform_3, window_bounds = array<i64: 3, 3, 8>}, {pipeline_mode = #tpu.pipeline_mode<synchronous>, transform_indices = @transform_4, window_bounds = array<i64: 8, 8>}, {pipeline_mode = #tpu.pipeline_mode<synchronous>, transform_indices = @transform_5, window_bounds = array<i64: 1, 8>}, {pipeline_mode = #tpu.pipeline_mode<synchronous>, transform_indices = @transform_6, window_bounds = array<i64: 3, 3, 8>}, {pipeline_mode = #tpu.pipeline_mode<synchronous>, transform_indices = @transform_7, window_bounds = array<i64: 8, 8>}, {pipeline_mode = #tpu.pipeline_mode<synchronous>, transform_indices = @transform_8, window_bounds = array<i64: 8, 1>}, {transform_indices = @transform_9, window_bounds = array<i64: 1, 8, 64>}]} {
    %c0 = arith.constant 0 : index
    %c0_0 = arith.constant 0 : index
    %c0_1 = arith.constant 0 : index
    %c0_2 = arith.constant 0 : index
    %0 = vector.load %arg1[%c0, %c0_0, %c0_1, %c0_2] : memref<1x8x8x16xf32, #tpu.memory_space<vmem>>, vector<1x8x8x16xf32>
    %1 = vector.shape_cast %0 : vector<1x8x8x16xf32> to vector<8x8x16xf32>
    %2 = vector.shape_cast %1 : vector<8x8x16xf32> to vector<64x16xf32>
    %c0_3 = arith.constant 0 : index
    %c0_4 = arith.constant 0 : index
    %3 = vector.load %arg2[%c0_3, %c0_4] : memref<16x8xf32, #tpu.memory_space<vmem>>, vector<16x8xf32>
    %cst = arith.constant dense<0.000000e+00> : vector<64x8xf32>
    %4 = tpu.matmul %2, %3, %cst {dimension_numbers = #tpu.dot_dimension_numbers<[1], [0], [0], [1], [0, 0, 1, 1], [], []>} : vector<64x16xf32>, vector<16x8xf32>, vector<64x8xf32> -> vector<64x8xf32>
    %c0_5 = arith.constant 0 : index
    %c0_6 = arith.constant 0 : index
    %5 = vector.load %arg3[%c0_5, %c0_6] : memref<1x8xf32, #tpu.memory_space<vmem>>, vector<1x8xf32>
    %6 = vector.broadcast %5 : vector<1x8xf32> to vector<64x8xf32>
    %7 = arith.addf %4, %6 : vector<64x8xf32>
    %cst_7 = arith.constant 0.000000e+00 : f32
    %8 = vector.broadcast %cst_7 : f32 to vector<64x8xf32>
    %9 = arith.maximumf %7, %8 : vector<64x8xf32>
    %cst_8 = arith.constant 0.000000e+00 : f32
    %10 = vector.broadcast %cst_8 : f32 to vector<10x10x8xf32>
    %c0_9 = arith.constant 0 : index
    %c0_10 = arith.constant 0 : index
    %c0_11 = arith.constant 0 : index
    %11 = vector.load %arg11[%c0_9, %c0_10, %c0_11] : memref<10x10x8xf32, #tpu.memory_space<vmem>>, vector<10x10x8xf32>
    tpu.vector_store %arg11[%c0_9, %c0_10, %c0_11], %10 {strides = array<i32>} : memref<10x10x8xf32, #tpu.memory_space<vmem>>, vector<10x10x8xf32>,
    %12 = vector.shape_cast %9 : vector<64x8xf32> to vector<8x8x8xf32>
    %c1 = arith.constant 1 : index
    %c1_12 = arith.constant 1 : index
    %c0_13 = arith.constant 0 : index
    %13 = vector.load %arg11[%c1, %c1_12, %c0_13] : memref<10x10x8xf32, #tpu.memory_space<vmem>>, vector<8x8x8xf32>
    tpu.vector_store %arg11[%c1, %c1_12, %c0_13], %12 {strides = array<i32>} : memref<10x10x8xf32, #tpu.memory_space<vmem>>, vector<8x8x8xf32>,
    %c0_14 = arith.constant 0 : index
    %c0_15 = arith.constant 0 : index
    %c0_16 = arith.constant 0 : index
    %14 = vector.load %arg11[%c0_14, %c0_15, %c0_16] : memref<10x10x8xf32, #tpu.memory_space<vmem>>, vector<10x10x8xf32>
    %c0_17 = arith.constant 0 : index
    %c0_18 = arith.constant 0 : index
    %c0_19 = arith.constant 0 : index
    %15 = vector.load %arg4[%c0_17, %c0_18, %c0_19] : memref<3x3x8xf32, #tpu.memory_space<vmem>>, vector<3x3x8xf32>
    %cst_20 = arith.constant 0.000000e+00 : f32
    %16 = vector.broadcast %cst_20 : f32 to vector<8x8x8xf32>
    %17 = vector.extract_strided_slice %14 {offsets = [0, 0, 0], sizes = [8, 8, 8], strides = [1, 1, 1]} : vector<10x10x8xf32> to vector<8x8x8xf32>
    %18 = vector.extract_strided_slice %15 {offsets = [0, 0, 0], sizes = [1, 1, 8], strides = [1, 1, 1]} : vector<3x3x8xf32> to vector<1x1x8xf32>
    %19 = vector.shape_cast %18 : vector<1x1x8xf32> to vector<8xf32>
    %20 = vector.shape_cast %19 : vector<8xf32> to vector<1x1x8xf32>
    %21 = vector.broadcast %20 : vector<1x1x8xf32> to vector<8x8x8xf32>
    %22 = arith.mulf %17, %21 : vector<8x8x8xf32>
    %23 = arith.addf %16, %22 : vector<8x8x8xf32>
    %24 = vector.extract_strided_slice %14 {offsets = [0, 1, 0], sizes = [8, 8, 8], strides = [1, 1, 1]} : vector<10x10x8xf32> to vector<8x8x8xf32>
    %25 = vector.extract_strided_slice %15 {offsets = [0, 1, 0], sizes = [1, 1, 8], strides = [1, 1, 1]} : vector<3x3x8xf32> to vector<1x1x8xf32>
    %26 = vector.shape_cast %25 : vector<1x1x8xf32> to vector<8xf32>
    %27 = vector.shape_cast %26 : vector<8xf32> to vector<1x1x8xf32>
    %28 = vector.broadcast %27 : vector<1x1x8xf32> to vector<8x8x8xf32>
    %29 = arith.mulf %24, %28 : vector<8x8x8xf32>
    %30 = arith.addf %23, %29 : vector<8x8x8xf32>
    %31 = vector.extract_strided_slice %14 {offsets = [0, 2, 0], sizes = [8, 8, 8], strides = [1, 1, 1]} : vector<10x10x8xf32> to vector<8x8x8xf32>
    %32 = vector.extract_strided_slice %15 {offsets = [0, 2, 0], sizes = [1, 1, 8], strides = [1, 1, 1]} : vector<3x3x8xf32> to vector<1x1x8xf32>
    %33 = vector.shape_cast %32 : vector<1x1x8xf32> to vector<8xf32>
    %34 = vector.shape_cast %33 : vector<8xf32> to vector<1x1x8xf32>
    %35 = vector.broadcast %34 : vector<1x1x8xf32> to vector<8x8x8xf32>
    %36 = arith.mulf %31, %35 : vector<8x8x8xf32>
    %37 = arith.addf %30, %36 : vector<8x8x8xf32>
    %38 = vector.extract_strided_slice %14 {offsets = [1, 0, 0], sizes = [8, 8, 8], strides = [1, 1, 1]} : vector<10x10x8xf32> to vector<8x8x8xf32>
    %39 = vector.extract_strided_slice %15 {offsets = [1, 0, 0], sizes = [1, 1, 8], strides = [1, 1, 1]} : vector<3x3x8xf32> to vector<1x1x8xf32>
    %40 = vector.shape_cast %39 : vector<1x1x8xf32> to vector<8xf32>
    %41 = vector.shape_cast %40 : vector<8xf32> to vector<1x1x8xf32>
    %42 = vector.broadcast %41 : vector<1x1x8xf32> to vector<8x8x8xf32>
    %43 = arith.mulf %38, %42 : vector<8x8x8xf32>
    %44 = arith.addf %37, %43 : vector<8x8x8xf32>
    %45 = vector.extract_strided_slice %14 {offsets = [1, 1, 0], sizes = [8, 8, 8], strides = [1, 1, 1]} : vector<10x10x8xf32> to vector<8x8x8xf32>
    %46 = vector.extract_strided_slice %15 {offsets = [1, 1, 0], sizes = [1, 1, 8], strides = [1, 1, 1]} : vector<3x3x8xf32> to vector<1x1x8xf32>
    %47 = vector.shape_cast %46 : vector<1x1x8xf32> to vector<8xf32>
    %48 = vector.shape_cast %47 : vector<8xf32> to vector<1x1x8xf32>
    %49 = vector.broadcast %48 : vector<1x1x8xf32> to vector<8x8x8xf32>
    %50 = arith.mulf %45, %49 : vector<8x8x8xf32>
    %51 = arith.addf %44, %50 : vector<8x8x8xf32>
    %52 = vector.extract_strided_slice %14 {offsets = [1, 2, 0], sizes = [8, 8, 8], strides = [1, 1, 1]} : vector<10x10x8xf32> to vector<8x8x8xf32>
    %53 = vector.extract_strided_slice %15 {offsets = [1, 2, 0], sizes = [1, 1, 8], strides = [1, 1, 1]} : vector<3x3x8xf32> to vector<1x1x8xf32>
    %54 = vector.shape_cast %53 : vector<1x1x8xf32> to vector<8xf32>
    %55 = vector.shape_cast %54 : vector<8xf32> to vector<1x1x8xf32>
    %56 = vector.broadcast %55 : vector<1x1x8xf32> to vector<8x8x8xf32>
    %57 = arith.mulf %52, %56 : vector<8x8x8xf32>
    %58 = arith.addf %51, %57 : vector<8x8x8xf32>
    %59 = vector.extract_strided_slice %14 {offsets = [2, 0, 0], sizes = [8, 8, 8], strides = [1, 1, 1]} : vector<10x10x8xf32> to vector<8x8x8xf32>
    %60 = vector.extract_strided_slice %15 {offsets = [2, 0, 0], sizes = [1, 1, 8], strides = [1, 1, 1]} : vector<3x3x8xf32> to vector<1x1x8xf32>
    %61 = vector.shape_cast %60 : vector<1x1x8xf32> to vector<8xf32>
    %62 = vector.shape_cast %61 : vector<8xf32> to vector<1x1x8xf32>
    %63 = vector.broadcast %62 : vector<1x1x8xf32> to vector<8x8x8xf32>
    %64 = arith.mulf %59, %63 : vector<8x8x8xf32>
    %65 = arith.addf %58, %64 : vector<8x8x8xf32>
    %66 = vector.extract_strided_slice %14 {offsets = [2, 1, 0], sizes = [8, 8, 8], strides = [1, 1, 1]} : vector<10x10x8xf32> to vector<8x8x8xf32>
    %67 = vector.extract_strided_slice %15 {offsets = [2, 1, 0], sizes = [1, 1, 8], strides = [1, 1, 1]} : vector<3x3x8xf32> to vector<1x1x8xf32>
    %68 = vector.shape_cast %67 : vector<1x1x8xf32> to vector<8xf32>
    %69 = vector.shape_cast %68 : vector<8xf32> to vector<1x1x8xf32>
    %70 = vector.broadcast %69 : vector<1x1x8xf32> to vector<8x8x8xf32>
    %71 = arith.mulf %66, %70 : vector<8x8x8xf32>
    %72 = arith.addf %65, %71 : vector<8x8x8xf32>
    %73 = vector.extract_strided_slice %14 {offsets = [2, 2, 0], sizes = [8, 8, 8], strides = [1, 1, 1]} : vector<10x10x8xf32> to vector<8x8x8xf32>
    %74 = vector.extract_strided_slice %15 {offsets = [2, 2, 0], sizes = [1, 1, 8], strides = [1, 1, 1]} : vector<3x3x8xf32> to vector<1x1x8xf32>
    %75 = vector.shape_cast %74 : vector<1x1x8xf32> to vector<8xf32>
    %76 = vector.shape_cast %75 : vector<8xf32> to vector<1x1x8xf32>
    %77 = vector.broadcast %76 : vector<1x1x8xf32> to vector<8x8x8xf32>
    %78 = arith.mulf %73, %77 : vector<8x8x8xf32>
    %79 = arith.addf %72, %78 : vector<8x8x8xf32>
    %80 = vector.shape_cast %79 : vector<8x8x8xf32> to vector<64x8xf32>
    %c0_21 = arith.constant 0 : index
    %c0_22 = arith.constant 0 : index
    %81 = vector.load %arg5[%c0_21, %c0_22] : memref<8x8xf32, #tpu.memory_space<vmem>>, vector<8x8xf32>
    %cst_23 = arith.constant dense<0.000000e+00> : vector<64x8xf32>
    %82 = tpu.matmul %80, %81, %cst_23 {dimension_numbers = #tpu.dot_dimension_numbers<[1], [0], [0], [1], [0, 0, 1, 1], [], []>} : vector<64x8xf32>, vector<8x8xf32>, vector<64x8xf32> -> vector<64x8xf32>
    %c0_24 = arith.constant 0 : index
    %c0_25 = arith.constant 0 : index
    %83 = vector.load %arg6[%c0_24, %c0_25] : memref<1x8xf32, #tpu.memory_space<vmem>>, vector<1x8xf32>
    %84 = vector.broadcast %83 : vector<1x8xf32> to vector<64x8xf32>
    %85 = arith.addf %82, %84 : vector<64x8xf32>
    %cst_26 = arith.constant 0.000000e+00 : f32
    %86 = vector.broadcast %cst_26 : f32 to vector<64x8xf32>
    %87 = arith.maximumf %85, %86 : vector<64x8xf32>
    %88 = vector.shape_cast %87 : vector<64x8xf32> to vector<8x8x8xf32>
    %c1_27 = arith.constant 1 : index
    %c1_28 = arith.constant 1 : index
    %c0_29 = arith.constant 0 : index
    %89 = vector.load %arg11[%c1_27, %c1_28, %c0_29] : memref<10x10x8xf32, #tpu.memory_space<vmem>>, vector<8x8x8xf32>
    tpu.vector_store %arg11[%c1_27, %c1_28, %c0_29], %88 {strides = array<i32>} : memref<10x10x8xf32, #tpu.memory_space<vmem>>, vector<8x8x8xf32>,
    %c0_30 = arith.constant 0 : index
    %c0_31 = arith.constant 0 : index
    %c0_32 = arith.constant 0 : index
    %90 = vector.load %arg11[%c0_30, %c0_31, %c0_32] : memref<10x10x8xf32, #tpu.memory_space<vmem>>, vector<10x10x8xf32>
    %c0_33 = arith.constant 0 : index
    %c0_34 = arith.constant 0 : index
    %c0_35 = arith.constant 0 : index
    %91 = vector.load %arg7[%c0_33, %c0_34, %c0_35] : memref<3x3x8xf32, #tpu.memory_space<vmem>>, vector<3x3x8xf32>
    %cst_36 = arith.constant 0.000000e+00 : f32
    %92 = vector.broadcast %cst_36 : f32 to vector<8x8x8xf32>
    %93 = vector.extract_strided_slice %90 {offsets = [0, 0, 0], sizes = [8, 8, 8], strides = [1, 1, 1]} : vector<10x10x8xf32> to vector<8x8x8xf32>
    %94 = vector.extract_strided_slice %91 {offsets = [0, 0, 0], sizes = [1, 1, 8], strides = [1, 1, 1]} : vector<3x3x8xf32> to vector<1x1x8xf32>
    %95 = vector.shape_cast %94 : vector<1x1x8xf32> to vector<8xf32>
    %96 = vector.shape_cast %95 : vector<8xf32> to vector<1x1x8xf32>
    %97 = vector.broadcast %96 : vector<1x1x8xf32> to vector<8x8x8xf32>
    %98 = arith.mulf %93, %97 : vector<8x8x8xf32>
    %99 = arith.addf %92, %98 : vector<8x8x8xf32>
    %100 = vector.extract_strided_slice %90 {offsets = [0, 1, 0], sizes = [8, 8, 8], strides = [1, 1, 1]} : vector<10x10x8xf32> to vector<8x8x8xf32>
    %101 = vector.extract_strided_slice %91 {offsets = [0, 1, 0], sizes = [1, 1, 8], strides = [1, 1, 1]} : vector<3x3x8xf32> to vector<1x1x8xf32>
    %102 = vector.shape_cast %101 : vector<1x1x8xf32> to vector<8xf32>
    %103 = vector.shape_cast %102 : vector<8xf32> to vector<1x1x8xf32>
    %104 = vector.broadcast %103 : vector<1x1x8xf32> to vector<8x8x8xf32>
    %105 = arith.mulf %100, %104 : vector<8x8x8xf32>
    %106 = arith.addf %99, %105 : vector<8x8x8xf32>
    %107 = vector.extract_strided_slice %90 {offsets = [0, 2, 0], sizes = [8, 8, 8], strides = [1, 1, 1]} : vector<10x10x8xf32> to vector<8x8x8xf32>
    %108 = vector.extract_strided_slice %91 {offsets = [0, 2, 0], sizes = [1, 1, 8], strides = [1, 1, 1]} : vector<3x3x8xf32> to vector<1x1x8xf32>
    %109 = vector.shape_cast %108 : vector<1x1x8xf32> to vector<8xf32>
    %110 = vector.shape_cast %109 : vector<8xf32> to vector<1x1x8xf32>
    %111 = vector.broadcast %110 : vector<1x1x8xf32> to vector<8x8x8xf32>
    %112 = arith.mulf %107, %111 : vector<8x8x8xf32>
    %113 = arith.addf %106, %112 : vector<8x8x8xf32>
    %114 = vector.extract_strided_slice %90 {offsets = [1, 0, 0], sizes = [8, 8, 8], strides = [1, 1, 1]} : vector<10x10x8xf32> to vector<8x8x8xf32>
    %115 = vector.extract_strided_slice %91 {offsets = [1, 0, 0], sizes = [1, 1, 8], strides = [1, 1, 1]} : vector<3x3x8xf32> to vector<1x1x8xf32>
    %116 = vector.shape_cast %115 : vector<1x1x8xf32> to vector<8xf32>
    %117 = vector.shape_cast %116 : vector<8xf32> to vector<1x1x8xf32>
    %118 = vector.broadcast %117 : vector<1x1x8xf32> to vector<8x8x8xf32>
    %119 = arith.mulf %114, %118 : vector<8x8x8xf32>
    %120 = arith.addf %113, %119 : vector<8x8x8xf32>
    %121 = vector.extract_strided_slice %90 {offsets = [1, 1, 0], sizes = [8, 8, 8], strides = [1, 1, 1]} : vector<10x10x8xf32> to vector<8x8x8xf32>
    %122 = vector.extract_strided_slice %91 {offsets = [1, 1, 0], sizes = [1, 1, 8], strides = [1, 1, 1]} : vector<3x3x8xf32> to vector<1x1x8xf32>
    %123 = vector.shape_cast %122 : vector<1x1x8xf32> to vector<8xf32>
    %124 = vector.shape_cast %123 : vector<8xf32> to vector<1x1x8xf32>
    %125 = vector.broadcast %124 : vector<1x1x8xf32> to vector<8x8x8xf32>
    %126 = arith.mulf %121, %125 : vector<8x8x8xf32>
    %127 = arith.addf %120, %126 : vector<8x8x8xf32>
    %128 = vector.extract_strided_slice %90 {offsets = [1, 2, 0], sizes = [8, 8, 8], strides = [1, 1, 1]} : vector<10x10x8xf32> to vector<8x8x8xf32>
    %129 = vector.extract_strided_slice %91 {offsets = [1, 2, 0], sizes = [1, 1, 8], strides = [1, 1, 1]} : vector<3x3x8xf32> to vector<1x1x8xf32>
    %130 = vector.shape_cast %129 : vector<1x1x8xf32> to vector<8xf32>
    %131 = vector.shape_cast %130 : vector<8xf32> to vector<1x1x8xf32>
    %132 = vector.broadcast %131 : vector<1x1x8xf32> to vector<8x8x8xf32>
    %133 = arith.mulf %128, %132 : vector<8x8x8xf32>
    %134 = arith.addf %127, %133 : vector<8x8x8xf32>
    %135 = vector.extract_strided_slice %90 {offsets = [2, 0, 0], sizes = [8, 8, 8], strides = [1, 1, 1]} : vector<10x10x8xf32> to vector<8x8x8xf32>
    %136 = vector.extract_strided_slice %91 {offsets = [2, 0, 0], sizes = [1, 1, 8], strides = [1, 1, 1]} : vector<3x3x8xf32> to vector<1x1x8xf32>
    %137 = vector.shape_cast %136 : vector<1x1x8xf32> to vector<8xf32>
    %138 = vector.shape_cast %137 : vector<8xf32> to vector<1x1x8xf32>
    %139 = vector.broadcast %138 : vector<1x1x8xf32> to vector<8x8x8xf32>
    %140 = arith.mulf %135, %139 : vector<8x8x8xf32>
    %141 = arith.addf %134, %140 : vector<8x8x8xf32>
    %142 = vector.extract_strided_slice %90 {offsets = [2, 1, 0], sizes = [8, 8, 8], strides = [1, 1, 1]} : vector<10x10x8xf32> to vector<8x8x8xf32>
    %143 = vector.extract_strided_slice %91 {offsets = [2, 1, 0], sizes = [1, 1, 8], strides = [1, 1, 1]} : vector<3x3x8xf32> to vector<1x1x8xf32>
    %144 = vector.shape_cast %143 : vector<1x1x8xf32> to vector<8xf32>
    %145 = vector.shape_cast %144 : vector<8xf32> to vector<1x1x8xf32>
    %146 = vector.broadcast %145 : vector<1x1x8xf32> to vector<8x8x8xf32>
    %147 = arith.mulf %142, %146 : vector<8x8x8xf32>
    %148 = arith.addf %141, %147 : vector<8x8x8xf32>
    %149 = vector.extract_strided_slice %90 {offsets = [2, 2, 0], sizes = [8, 8, 8], strides = [1, 1, 1]} : vector<10x10x8xf32> to vector<8x8x8xf32>
    %150 = vector.extract_strided_slice %91 {offsets = [2, 2, 0], sizes = [1, 1, 8], strides = [1, 1, 1]} : vector<3x3x8xf32> to vector<1x1x8xf32>
    %151 = vector.shape_cast %150 : vector<1x1x8xf32> to vector<8xf32>
    %152 = vector.shape_cast %151 : vector<8xf32> to vector<1x1x8xf32>
    %153 = vector.broadcast %152 : vector<1x1x8xf32> to vector<8x8x8xf32>
    %154 = arith.mulf %149, %153 : vector<8x8x8xf32>
    %155 = arith.addf %148, %154 : vector<8x8x8xf32>
    %c0_37 = arith.constant 0 : index
    %c0_38 = arith.constant 0 : index
    %156 = vector.load %arg8[%c0_37, %c0_38] : memref<8x8xf32, #tpu.memory_space<vmem>>, vector<8x8xf32>
    %157 = vector.shape_cast %155 : vector<8x8x8xf32> to vector<64x8xf32>
    %158 = tpu.transpose %157, [1, 0] : vector<64x8xf32> -> vector<8x64xf32>
    %cst_39 = arith.constant dense<0.000000e+00> : vector<8x64xf32>
    %159 = tpu.matmul %156, %158, %cst_39 {dimension_numbers = #tpu.dot_dimension_numbers<[1], [0], [0], [1], [0, 0, 1, 1], [], []>} : vector<8x8xf32>, vector<8x64xf32>, vector<8x64xf32> -> vector<8x64xf32>
    %c0_40 = arith.constant 0 : index
    %c0_41 = arith.constant 0 : index
    %160 = vector.load %arg9[%c0_40, %c0_41] : memref<8x1xf32, #tpu.memory_space<vmem>>, vector<8x1xf32>
    %161 = vector.broadcast %160 : vector<8x1xf32> to vector<8x64xf32>
    %162 = arith.addf %159, %161 : vector<8x64xf32>
    %cst_42 = arith.constant 0.000000e+00 : f32
    %163 = vector.broadcast %cst_42 : f32 to vector<8x64xf32>
    %164 = arith.maximumf %162, %163 : vector<8x64xf32>
    %165 = vector.shape_cast %164 : vector<8x64xf32> to vector<1x8x64xf32>
    %c0_43 = arith.constant 0 : index
    %c0_44 = arith.constant 0 : index
    %c0_45 = arith.constant 0 : index
    %166 = vector.load %arg10[%c0_43, %c0_44, %c0_45] : memref<1x8x64xf32, #tpu.memory_space<vmem>>, vector<1x8x64xf32>
    tpu.vector_store %arg10[%c0_43, %c0_44, %c0_45], %165 {strides = array<i32>} : memref<1x8x64xf32, #tpu.memory_space<vmem>>, vector<1x8x64xf32>,
    return
  }
  func.func @transform_0(%arg0: i32) -> (i32, i32, i32, i32) {
    %c0_i32 = arith.constant 0 : i32
    %c0_i32_0 = arith.constant 0 : i32
    %c0_i32_1 = arith.constant 0 : i32
    %c0_i32_2 = arith.constant 0 : i32
    return %arg0, %c0_i32, %c0_i32_0, %c0_i32_1 : i32, i32, i32, i32
  }
  func.func @transform_1(%arg0: i32) -> (i32, i32) {
    %c0_i32 = arith.constant 0 : i32
    %c0_i32_0 = arith.constant 0 : i32
    %c0_i32_1 = arith.constant 0 : i32
    return %c0_i32, %c0_i32_0 : i32, i32
  }
  func.func @transform_2(%arg0: i32) -> (i32, i32) {
    %c0_i32 = arith.constant 0 : i32
    %c0_i32_0 = arith.constant 0 : i32
    %c0_i32_1 = arith.constant 0 : i32
    return %c0_i32, %c0_i32_0 : i32, i32
  }
  func.func @transform_3(%arg0: i32) -> (i32, i32, i32) {
    %c0_i32 = arith.constant 0 : i32
    %c0_i32_0 = arith.constant 0 : i32
    %c0_i32_1 = arith.constant 0 : i32
    %c0_i32_2 = arith.constant 0 : i32
    return %c0_i32, %c0_i32_0, %c0_i32_1 : i32, i32, i32
  }
  func.func @transform_4(%arg0: i32) -> (i32, i32) {
    %c0_i32 = arith.constant 0 : i32
    %c0_i32_0 = arith.constant 0 : i32
    %c0_i32_1 = arith.constant 0 : i32
    return %c0_i32, %c0_i32_0 : i32, i32
  }
  func.func @transform_5(%arg0: i32) -> (i32, i32) {
    %c0_i32 = arith.constant 0 : i32
    %c0_i32_0 = arith.constant 0 : i32
    %c0_i32_1 = arith.constant 0 : i32
    return %c0_i32, %c0_i32_0 : i32, i32
  }
  func.func @transform_6(%arg0: i32) -> (i32, i32, i32) {
    %c0_i32 = arith.constant 0 : i32
    %c0_i32_0 = arith.constant 0 : i32
    %c0_i32_1 = arith.constant 0 : i32
    %c0_i32_2 = arith.constant 0 : i32
    return %c0_i32, %c0_i32_0, %c0_i32_1 : i32, i32, i32
  }
  func.func @transform_7(%arg0: i32) -> (i32, i32) {
    %c0_i32 = arith.constant 0 : i32
    %c0_i32_0 = arith.constant 0 : i32
    %c0_i32_1 = arith.constant 0 : i32
    return %c0_i32, %c0_i32_0 : i32, i32
  }
  func.func @transform_8(%arg0: i32) -> (i32, i32) {
    %c0_i32 = arith.constant 0 : i32
    %c0_i32_0 = arith.constant 0 : i32
    %c0_i32_1 = arith.constant 0 : i32
    return %c0_i32, %c0_i32_0 : i32, i32
  }
  func.func @transform_9(%arg0: i32) -> (i32, i32, i32) {
    %c0_i32 = arith.constant 0 : i32
    %c0_i32_0 = arith.constant 0 : i32
    %c0_i32_1 = arith.constant 0 : i32
    return %arg0, %c0_i32, %c0_i32_0 : i32, i32, i32
  }
}

</mosaic_0001>

<llo_original>
// kernel: down_forward.1
$region0: #{down_forward.1}
  #allocation0 [shape = 'u32[]', space=smem, size = 0x4, offset = 0x4, fixed_abs, tag = 'smem constant byte address 0x4 - core index']
  #allocation1 [shape = 'u32[144,128]{1,0:T(1,128)}', space=vmem, size = 0x12000, scoped, tag = 'internal scratch']
  #allocation2 [shape = 'f32[10,10,8]{2,1,0:T(8,128)}', space=vmem, size = 0x14000, scoped, tag = 'scratch operand']
  %s0 = inlined_call_operand.vmem [shape: f32[2,8,8,16], index: 0, kind: input, shape index: {}]
  %s1 = inlined_call_operand.vmem [shape: f32[16,8], index: 1, kind: input, shape index: {}]
  %s2 = inlined_call_operand.vmem [shape: f32[1,8], index: 2, kind: input, shape index: {}]
  %s3 = inlined_call_operand.vmem [shape: f32[3,3,8], index: 3, kind: input, shape index: {}]
  %s4 = inlined_call_operand.vmem [shape: f32[8,8], index: 4, kind: input, shape index: {}]
  %s5 = inlined_call_operand.vmem [shape: f32[1,8], index: 5, kind: input, shape index: {}]
  %s6 = inlined_call_operand.vmem [shape: f32[3,3,8], index: 6, kind: input, shape index: {}]
  %s7 = inlined_call_operand.vmem [shape: f32[8,8], index: 7, kind: input, shape index: {}]
  %s8 = inlined_call_operand.vmem [shape: f32[8,1], index: 8, kind: input, shape index: {}]
  %s9 = inlined_call_operand.vmem [shape: f32[2,8,64], index: 9, kind: output, shape index: {}]
  %s10 = sld [smem:[#allocation0]]
  $region69: #{down_forward.1} parent=0
    _
  %s12 = ssub.s32 1, %s10
  %s13 = scalar_select 0, %s12, %s10
  loop: start=0, step=1, limit=4
  $region2: #{down_forward.1} parent=0 // loop_pre_header
    _
  $region3: #{down_forward.1} parent=0 // loop_header
    %s15 = sphi 0, %s19
    %p16 = scmp.ge.s32.totalorder %s15, 4
    %s25 = sphi 0, %s27
    %s28 = sphi 0, %s25
    %s29 = sphi 0, %s28
    %s45 = sphi 0, %s29
    %s49 = sphi 0, %s49
    %s51 = sphi 0, %s49
    %s52 = sphi 0, %s51
    %s66 = sphi 0, %s52
    %s70 = sphi 0, %s70
    %s72 = sphi 0, %s70
    %s73 = sphi 0, %s72
    %s87 = sphi 0, %s73
    %s91 = sphi 0, %s91
    %s93 = sphi 0, %s91
    %s94 = sphi 0, %s93
    %s108 = sphi 0, %s94
    %s112 = sphi 0, %s112
    %s114 = sphi 0, %s112
    %s115 = sphi 0, %s114
    %s129 = sphi 0, %s115
    %s133 = sphi 0, %s133
    %s135 = sphi 0, %s133
    %s136 = sphi 0, %s135
    %s150 = sphi 0, %s136
    %s154 = sphi 0, %s154
    %s156 = sphi 0, %s154
    %s157 = sphi 0, %s156
    %s171 = sphi 0, %s157
    %s175 = sphi 0, %s175
    %s177 = sphi 0, %s175
    %s178 = sphi 0, %s177
    %s192 = sphi 0, %s178
    %s196 = sphi 0, %s196
    %s198 = sphi 0, %s196
    %s199 = sphi 0, %s198
    %s213 = sphi 0, %s199
    %s219 = sphi 0, %s221
    %s222 = sphi 0, %s219
    %s223 = sphi 0, %s222
    %s239 = sphi 0, %s223
  $region4: #{down_forward.1} parent=0 // loop_header_branch
    %18 = sbr.rel (%p16) target = $region8
  $region5: #{down_forward.1} parent=0 // loop_body
    %s20 = ssub.s32 %s15, 1
    %s21 = ssub.s32 %s15, 2
    %s22 = sadd.s32 %s15, 1
    %s23 = ssub.s32 %s15, %s22
    %p24 = scmp.eq.s32.totalorder %s23, 0
    %s26 = sadd.s32 %s25, 1
    %s27 = scalar_select %p24, %s25, %s26
    %p30 = pneg %p24
    %p31 = scmp.eq.s32.totalorder %s15, 1
    %p32 = por %p30, %p31
    %p33 = scmp.ne.s32.totalorder %s25, %s28
    %p34 = scmp.eq.s32.totalorder %s15, 0
    %p35 = por %p33, %p34
    %p36 = scmp.ne.s32.totalorder %s25, %s28
    %p37 = scmp.eq.s32.totalorder %s20, 1
    %p38 = por %p36, %p37
    %p39 = scmp.ne.s32.totalorder %s28, %s29
    %p40 = scmp.eq.s32.totalorder %s20, 0
    %p41 = por %p39, %p40
    %p42 = scmp.ne.s32.totalorder %s28, %s29
    %p43 = scmp.eq.s32.totalorder %s21, 1
    %p44 = por %p42, %p43
    %p46 = scmp.ne.s32.totalorder %s29, %s45
    %p47 = scmp.eq.s32.totalorder %s21, 0
    %p48 = por %p46, %p47
    %s50 = sadd.s32 %s49, 1
    %p53 = scmp.eq.s32.totalorder %s15, 1
    %p54 = scmp.ne.s32.totalorder %s49, %s51
    %p55 = scmp.eq.s32.totalorder %s15, 0
    %p56 = por %p54, %p55
    %p57 = scmp.ne.s32.totalorder %s49, %s51
    %p58 = scmp.eq.s32.totalorder %s20, 1
    %p59 = por %p57, %p58
    %p60 = scmp.ne.s32.totalorder %s51, %s52
    %p61 = scmp.eq.s32.totalorder %s20, 0
    %p62 = por %p60, %p61
    %p63 = scmp.ne.s32.totalorder %s51, %s52
    %p64 = scmp.eq.s32.totalorder %s21, 1
    %p65 = por %p63, %p64
    %p67 = scmp.ne.s32.totalorder %s52, %s66
    %p68 = scmp.eq.s32.totalorder %s21, 0
    %p69 = por %p67, %p68
    %s71 = sadd.s32 %s70, 1
    %p74 = scmp.eq.s32.totalorder %s15, 1
    %p75 = scmp.ne.s32.totalorder %s70, %s72
    %p76 = scmp.eq.s32.totalorder %s15, 0
    %p77 = por %p75, %p76
    %p78 = scmp.ne.s32.totalorder %s70, %s72
    %p79 = scmp.eq.s32.totalorder %s20, 1
    %p80 = por %p78, %p79
    %p81 = scmp.ne.s32.totalorder %s72, %s73
    %p82 = scmp.eq.s32.totalorder %s20, 0
    %p83 = por %p81, %p82
    %p84 = scmp.ne.s32.totalorder %s72, %s73
    %p85 = scmp.eq.s32.totalorder %s21, 1
    %p86 = por %p84, %p85
    %p88 = scmp.ne.s32.totalorder %s73, %s87
    %p89 = scmp.eq.s32.totalorder %s21, 0
    %p90 = por %p88, %p89
    %s92 = sadd.s32 %s91, 1
    %p95 = scmp.eq.s32.totalorder %s15, 1
    %p96 = scmp.ne.s32.totalorder %s91, %s93
    %p97 = scmp.eq.s32.totalorder %s15, 0
    %p98 = por %p96, %p97
    %p99 = scmp.ne.s32.totalorder %s91, %s93
    %p100 = scmp.eq.s32.totalorder %s20, 1
    %p101 = por %p99, %p100
    %p102 = scmp.ne.s32.totalorder %s93, %s94
    %p103 = scmp.eq.s32.totalorder %s20, 0
    %p104 = por %p102, %p103
    %p105 = scmp.ne.s32.totalorder %s93, %s94
    %p106 = scmp.eq.s32.totalorder %s21, 1
    %p107 = por %p105, %p106
    %p109 = scmp.ne.s32.totalorder %s94, %s108
    %p110 = scmp.eq.s32.totalorder %s21, 0
    %p111 = por %p109, %p110
    %s113 = sadd.s32 %s112, 1
    %p116 = scmp.eq.s32.totalorder %s15, 1
    %p117 = scmp.ne.s32.totalorder %s112, %s114
    %p118 = scmp.eq.s32.totalorder %s15, 0
    %p119 = por %p117, %p118
    %p120 = scmp.ne.s32.totalorder %s112, %s114
    %p121 = scmp.eq.s32.totalorder %s20, 1
    %p122 = por %p120, %p121
    %p123 = scmp.ne.s32.totalorder %s114, %s115
    %p124 = scmp.eq.s32.totalorder %s20, 0
    %p125 = por %p123, %p124
    %p126 = scmp.ne.s32.totalorder %s114, %s115
    %p127 = scmp.eq.s32.totalorder %s21, 1
    %p128 = por %p126, %p127
    %p130 = scmp.ne.s32.totalorder %s115, %s129
    %p131 = scmp.eq.s32.totalorder %s21, 0
    %p132 = por %p130, %p131
    %s134 = sadd.s32 %s133, 1
    %p137 = scmp.eq.s32.totalorder %s15, 1
    %p138 = scmp.ne.s32.totalorder %s133, %s135
    %p139 = scmp.eq.s32.totalorder %s15, 0
    %p140 = por %p138, %p139
    %p141 = scmp.ne.s32.totalorder %s133, %s135
    %p142 = scmp.eq.s32.totalorder %s20, 1
    %p143 = por %p141, %p142
    %p144 = scmp.ne.s32.totalorder %s135, %s136
    %p145 = scmp.eq.s32.totalorder %s20, 0
    %p146 = por %p144, %p145
    %p147 = scmp.ne.s32.totalorder %s135, %s136
    %p148 = scmp.eq.s32.totalorder %s21, 1
    %p149 = por %p147, %p148
    %p151 = scmp.ne.s32.totalorder %s136, %s150
    %p152 = scmp.eq.s32.totalorder %s21, 0
    %p153 = por %p151, %p152
    %s155 = sadd.s32 %s154, 1
    %p158 = scmp.eq.s32.totalorder %s15, 1
    %p159 = scmp.ne.s32.totalorder %s154, %s156
    %p160 = scmp.eq.s32.totalorder %s15, 0
    %p161 = por %p159, %p160
    %p162 = scmp.ne.s32.totalorder %s154, %s156
    %p163 = scmp.eq.s32.totalorder %s20, 1
    %p164 = por %p162, %p163
    %p165 = scmp.ne.s32.totalorder %s156, %s157
    %p166 = scmp.eq.s32.totalorder %s20, 0
    %p167 = por %p165, %p166
    %p168 = scmp.ne.s32.totalorder %s156, %s157
    %p169 = scmp.eq.s32.totalorder %s21, 1
    %p170 = por %p168, %p169
    %p172 = scmp.ne.s32.totalorder %s157, %s171
    %p173 = scmp.eq.s32.totalorder %s21, 0
    %p174 = por %p172, %p173
    %s176 = sadd.s32 %s175, 1
    %p179 = scmp.eq.s32.totalorder %s15, 1
    %p180 = scmp.ne.s32.totalorder %s175, %s177
    %p181 = scmp.eq.s32.totalorder %s15, 0
    %p182 = por %p180, %p181
    %p183 = scmp.ne.s32.totalorder %s175, %s177
    %p184 = scmp.eq.s32.totalorder %s20, 1
    %p185 = por %p183, %p184
    %p186 = scmp.ne.s32.totalorder %s177, %s178
    %p187 = scmp.eq.s32.totalorder %s20, 0
    %p188 = por %p186, %p187
    %p189 = scmp.ne.s32.totalorder %s177, %s178
    %p190 = scmp.eq.s32.totalorder %s21, 1
    %p191 = por %p189, %p190
    %p193 = scmp.ne.s32.totalorder %s178, %s192
    %p194 = scmp.eq.s32.totalorder %s21, 0
    %p195 = por %p193, %p194
    %s197 = sadd.s32 %s196, 1
    %p200 = scmp.eq.s32.totalorder %s15, 1
    %p201 = scmp.ne.s32.totalorder %s196, %s198
    %p202 = scmp.eq.s32.totalorder %s15, 0
    %p203 = por %p201, %p202
    %p204 = scmp.ne.s32.totalorder %s196, %s198
    %p205 = scmp.eq.s32.totalorder %s20, 1
    %p206 = por %p204, %p205
    %p207 = scmp.ne.s32.totalorder %s198, %s199
    %p208 = scmp.eq.s32.totalorder %s20, 0
    %p209 = por %p207, %p208
    %p210 = scmp.ne.s32.totalorder %s198, %s199
    %p211 = scmp.eq.s32.totalorder %s21, 1
    %p212 = por %p210, %p211
    %p214 = scmp.ne.s32.totalorder %s199, %s213
    %p215 = scmp.eq.s32.totalorder %s21, 0
    %p216 = por %p214, %p215
    %s217 = ssub.s32 %s15, %s22
    %p218 = scmp.eq.s32.totalorder %s217, 0
    %s220 = sadd.s32 %s219, 1
    %s221 = scalar_select %p218, %s219, %s220
    %p224 = pneg %p218
    %p225 = scmp.eq.s32.totalorder %s15, 1
    %p226 = por %p224, %p225
    %p227 = scmp.ne.s32.totalorder %s219, %s222
    %p228 = scmp.eq.s32.totalorder %s15, 0
    %p229 = por %p227, %p228
    %p230 = scmp.ne.s32.totalorder %s219, %s222
    %p231 = scmp.eq.s32.totalorder %s20, 1
    %p232 = por %p230, %p231
    %p233 = scmp.ne.s32.totalorder %s222, %s223
    %p234 = scmp.eq.s32.totalorder %s20, 0
    %p235 = por %p233, %p234
    %p236 = scmp.ne.s32.totalorder %s222, %s223
    %p237 = scmp.eq.s32.totalorder %s21, 1
    %p238 = por %p236, %p237
    %p240 = scmp.ne.s32.totalorder %s223, %s239
    %p241 = scmp.eq.s32.totalorder %s21, 0
    %p242 = por %p240, %p241
    %p243 = scmp.le.s32.totalorder 1, %s15
    %p244 = scmp.lt.s32.totalorder %s15, 3
    %p245 = pnand %p243, %p244
    %p246 = pneg %p245
    // Predicated region
    $region9: #{down_forward.1} parent=5 // pred_check
      _
    $region10: #{down_forward.1} parent=5 // pred_check_branch
      %248 = sbr.rel (%p245) target = $region12
    $region11: #{down_forward.1} parent=5 // pred_region
      %s249 = ssub.s32 %s15, 1
      // Predicated region
      $region13: #{down_forward.1} parent=11 // pred_check
        %p250 = pneg %p62
      $region14: #{down_forward.1} parent=11 // pred_check_branch
        %252 = sbr.rel (%p250) target = $region16
      $region15: #{down_forward.1} parent=11 // pred_region
        _
      $region16: #{down_forward.1} parent=11 // pred_fallthru
        _
      // Predicated region
      $region17: #{down_forward.1} parent=11 // pred_check
        %p253 = pneg %p83
      $region18: #{down_forward.1} parent=11 // pred_check_branch
        %255 = sbr.rel (%p253) target = $region20
      $region19: #{down_forward.1} parent=11 // pred_region
        _
      $region20: #{down_forward.1} parent=11 // pred_fallthru
        _
      // Predicated region
      $region21: #{down_forward.1} parent=11 // pred_check
        %p256 = pneg %p104
      $region22: #{down_forward.1} parent=11 // pred_check_branch
        %258 = sbr.rel (%p256) target = $region24
      $region23: #{down_forward.1} parent=11 // pred_region
        _
      $region24: #{down_forward.1} parent=11 // pred_fallthru
        _
      // Predicated region
      $region25: #{down_forward.1} parent=11 // pred_check
        %p259 = pneg %p125
      $region26: #{down_forward.1} parent=11 // pred_check_branch
        %261 = sbr.rel (%p259) target = $region28
      $region27: #{down_forward.1} parent=11 // pred_region
        _
      $region28: #{down_forward.1} parent=11 // pred_fallthru
        _
      // Predicated region
      $region29: #{down_forward.1} parent=11 // pred_check
        %p262 = pneg %p146
      $region30: #{down_forward.1} parent=11 // pred_check_branch
        %264 = sbr.rel (%p262) target = $region32
      $region31: #{down_forward.1} parent=11 // pred_region
        _
      $region32: #{down_forward.1} parent=11 // pred_fallthru
        _
      // Predicated region
      $region33: #{down_forward.1} parent=11 // pred_check
        %p265 = pneg %p167
      $region34: #{down_forward.1} parent=11 // pred_check_branch
        %267 = sbr.rel (%p265) target = $region36
      $region35: #{down_forward.1} parent=11 // pred_region
        _
      $region36: #{down_forward.1} parent=11 // pred_fallthru
        _
      // Predicated region
      $region37: #{down_forward.1} parent=11 // pred_check
        %p268 = pneg %p188
      $region38: #{down_forward.1} parent=11 // pred_check_branch
        %270 = sbr.rel (%p268) target = $region40
      $region39: #{down_forward.1} parent=11 // pred_region
        _
      $region40: #{down_forward.1} parent=11 // pred_fallthru
        _
      // Predicated region
      $region41: #{down_forward.1} parent=11 // pred_check
        %p271 = pneg %p209
      $region42: #{down_forward.1} parent=11 // pred_check_branch
        %273 = sbr.rel (%p271) target = $region44
      $region43: #{down_forward.1} parent=11 // pred_region
        _
      $region44: #{down_forward.1} parent=11 // pred_fallthru
        _
    $region12: #{down_forward.1} parent=5 // pred_fallthru
      _
    %p274 = scmp.lt.s32.totalorder %s15, 2
    // Predicated region
    $region45: #{down_forward.1} parent=5 // pred_check
      %p275 = pneg %p274
    $region46: #{down_forward.1} parent=5 // pred_check_branch
      %277 = sbr.rel (%p275) target = $region48
    $region47: #{down_forward.1} parent=5 // pred_region
      // Predicated region
      $region49: #{down_forward.1} parent=47 // pred_check
        %p278 = pneg %p35
      $region50: #{down_forward.1} parent=47 // pred_check_branch
        %280 = sbr.rel (%p278) target = $region52
      $region51: #{down_forward.1} parent=47 // pred_region
        %p281 = scmp.lt.s32.totalorder %s15, 1
        %s282 = scalar_select %p281, %s15, 1
        %s283 = smul.addr %s282, 8
        %s284 = smul.addr %s283, 8
        %s285 = scalar_lea.vmem %s0, %s284
      $region52: #{down_forward.1} parent=47 // pred_fallthru
        _
    $region48: #{down_forward.1} parent=5 // pred_fallthru
      _
    %p286 = scmp.le.s32.totalorder 1, %s15
    %p287 = scmp.lt.s32.totalorder %s15, 3
    %p288 = pnand %p286, %p287
    %p289 = pneg %p288
    // Predicated region
    $region53: #{down_forward.1} parent=5 // pred_check
      _
    $region54: #{down_forward.1} parent=5 // pred_check_branch
      %291 = sbr.rel (%p288) target = $region56
    $region55: #{down_forward.1} parent=5 // pred_region
      %s292 = ssub.s32 %s15, 1
      %p293 = scmp.lt.s32.totalorder %s20, 1
      %s294 = scalar_select %p293, %s20, 1
      %s295 = smul.addr %s294, 8
      %s296 = smul.addr %s295, 8
      %s297 = scalar_lea.vmem %s0, %s296
      %p298 = pneg %p41
      %p299 = pneg %p38
      %p300 = pneg %p62
      %p301 = pneg %p59
      %p302 = pneg %p83
      %p303 = pneg %p80
      %p304 = pneg %p104
      %p305 = pneg %p101
      %p306 = pneg %p125
      %p307 = pneg %p122
      %p308 = pneg %p146
      %p309 = pneg %p143
      %p310 = pneg %p167
      %p311 = pneg %p164
      %p312 = pneg %p188
      %p313 = pneg %p185
      %p314 = pneg %p209
      %p315 = pneg %p206
      %p316 = pneg %p235
      %p317 = pneg %p232
      %p318 = scmp.lt.s32.totalorder %s20, 1
      %s319 = scalar_select %p318, %s20, 1
      %s320 = smul.addr %s319, 8
      %s321 = scalar_lea.vmem %s9, %s320
      %p322 = scmp.lt.s32.totalorder %s20, 1
      %s323 = scalar_select %p322, %s20, 1
      %s324 = smul.addr %s323, 8
      %s325 = smul.addr %s324, 8
      %s326 = scalar_lea.vmem %s0, %s325
      %p327 = scmp.lt.s32.totalorder %s20, 1
      %s328 = scalar_select %p327, %s20, 1
      %s329 = smul.addr %s328, 8
      %s330 = scalar_lea.vmem %s9, %s329
      %v331 = vld [vmem:[%s326] sm:$0xff]
      %v332 = vld [vmem:[%s326 + $0x8] sm:$0xff]
      %v333 = vld [vmem:[%s326 + $0x10] sm:$0xff]
      %v334 = vld [vmem:[%s326 + $0x18] sm:$0xff]
      %v335 = vld [vmem:[%s326 + $0x20] sm:$0xff]
      %v336 = vld [vmem:[%s326 + $0x28] sm:$0xff]
      %v337 = vld [vmem:[%s326 + $0x30] sm:$0xff]
      %v338 = vld [vmem:[%s326 + $0x38] sm:$0xff]
      %v339 = vld [vmem:[%s1] sm:$0xff]
      %v340 = vld [vmem:[%s1 + $0x8] sm:$0xff]
      %v341 = vld [vmem:[%s2] sm:$0x1]
      %v343 = vlaneseq
      %v344 = vshrl.u32 %v343, 7
      %v345 = vsub.s32 0, %v344
      %v346 = vrot.slane %v341, %v345
      %vm348 = vcmask 130048
      %v350 = vsel %vm348, %v331, 0
      %v353 = vsel %vm348, %v332, 0
      %v356 = vsel %vm348, %v333, 0
      %v359 = vsel %vm348, %v334, 0
      %v362 = vsel %vm348, %v335, 0
      %v365 = vsel %vm348, %v336, 0
      %v368 = vsel %vm348, %v337, 0
      %v371 = vsel %vm348, %v338, 0
      %373 = vmatprep.subr.mxu0 0.0
      %374 = vmatpush1.msra.mxu0 %v339
      %375 = vmatprep.subr.mxu0 0.0
      %376 = vmatpush1.msra.mxu0 %v340
      %377 = vmatprep.subr.mxu0 0.0
      %378 = vmatpush1.msra.mxu0 0.0
      %379 = vmatprep.subr.mxu0 0.0
      %380 = vmatpush1.msra.mxu0 0.0
      %381 = vmatprep.subr.mxu0 0.0
      %382 = vmatpush1.msra.mxu0 0.0
      %383 = vmatprep.subr.mxu0 0.0
      %384 = vmatpush1.msra.mxu0 0.0
      %385 = vmatprep.subr.mxu0 0.0
      %386 = vmatpush1.msra.mxu0 0.0
      %387 = vmatprep.subr.mxu0 0.0
      %388 = vmatpush1.msra.mxu0 0.0
      %389 = vmatprep.subr.mxu0 0.0
      %390 = vmatpush1.msra.mxu0 0.0
      %391 = vmatprep.subr.mxu0 0.0
      %392 = vmatpush1.msra.mxu0 0.0
      %393 = vmatprep.subr.mxu0 0.0
      %394 = vmatpush1.msra.mxu0 0.0
      %395 = vmatprep.subr.mxu0 0.0
      %396 = vmatpush1.msra.mxu0 0.0
      %397 = vmatprep.subr.mxu0 0.0
      %398 = vmatpush1.msra.mxu0 0.0
      %399 = vmatprep.subr.mxu0 0.0
      %400 = vmatpush1.msra.mxu0 0.0
      %401 = vmatprep.subr.mxu0 0.0
      %402 = vmatpush1.msra.mxu0 0.0
      %403 = vmatprep.subr.mxu0 0.0
      %404 = vmatpush1.msra.mxu0 0.0
      %405 = vmatprep.subr.mxu0 0.0
      %406 = vmatpush1.msra.mxu0 0.0
      %407 = vmatprep.subr.mxu0 0.0
      %408 = vmatpush1.msra.mxu0 0.0
      %409 = vmatprep.subr.mxu0 0.0
      %410 = vmatpush1.msra.mxu0 0.0
      %411 = vmatprep.subr.mxu0 0.0
      %412 = vmatpush1.msra.mxu0 0.0
      %413 = vmatprep.subr.mxu0 0.0
      %414 = vmatpush1.msra.mxu0 0.0
      %415 = vmatprep.subr.mxu0 0.0
      %416 = vmatpush1.msra.mxu0 0.0
      %417 = vmatprep.subr.mxu0 0.0
      %418 = vmatpush1.msra.mxu0 0.0
      %419 = vmatprep.subr.mxu0 0.0
      %420 = vmatpush1.msra.mxu0 0.0
      %421 = vmatprep.subr.mxu0 0.0
      %422 = vmatpush1.msra.mxu0 0.0
      %423 = vmatprep.subr.mxu0 0.0
      %424 = vmatpush1.msra.mxu0 0.0
      %425 = vmatprep.subr.mxu0 0.0
      %426 = vmatpush1.msra.mxu0 0.0
      %427 = vmatprep.subr.mxu0 0.0
      %428 = vmatpush1.msra.mxu0 0.0
      %429 = vmatprep.subr.mxu0 0.0
      %430 = vmatpush1.msra.mxu0 0.0
      %431 = vmatprep.subr.mxu0 0.0
      %432 = vmatpush1.msra.mxu0 0.0
      %433 = vmatprep.subr.mxu0 0.0
      %434 = vmatpush1.msra.mxu0 0.0
      %435 = vmatprep.subr.mxu0 0.0
      %436 = vmatpush1.msra.mxu0 0.0
      %437 = vmatprep.mubr.f32.mxu0 0.0
      %438 = vmatmul.mubr.f32.gmra.mrb[0].mxu0 %v350
      %v439 = vpop.f32.mrb[0].mxu0
      %v440 = vadd.f32 %v346, %v439
      %v441 = vpop.f32.mrb[0].mxu0
      %442 = vmatprep.mubr.f32.mxu0 0.0
      %443 = vmatmul.mubr.f32.gmra.mrb[0].mxu0 %v353
      %v444 = vpop.f32.mrb[0].mxu0
      %v445 = vadd.f32 %v346, %v444
      %v446 = vpop.f32.mrb[0].mxu0
      %447 = vmatprep.mubr.f32.mxu0 0.0
      %448 = vmatmul.mubr.f32.gmra.mrb[0].mxu0 %v356
      %v449 = vpop.f32.mrb[0].mxu0
      %v450 = vadd.f32 %v346, %v449
      %v451 = vpop.f32.mrb[0].mxu0
      %452 = vmatprep.mubr.f32.mxu0 0.0
      %453 = vmatmul.mubr.f32.gmra.mrb[0].mxu0 %v359
      %v454 = vpop.f32.mrb[0].mxu0
      %v455 = vadd.f32 %v346, %v454
      %v456 = vpop.f32.mrb[0].mxu0
      %457 = vmatprep.mubr.f32.mxu0 0.0
      %458 = vmatmul.mubr.f32.gmra.mrb[0].mxu0 %v362
      %v459 = vpop.f32.mrb[0].mxu0
      %v460 = vadd.f32 %v346, %v459
      %v461 = vpop.f32.mrb[0].mxu0
      %462 = vmatprep.mubr.f32.mxu0 0.0
      %463 = vmatmul.mubr.f32.gmra.mrb[0].mxu0 %v365
      %v464 = vpop.f32.mrb[0].mxu0
      %v465 = vadd.f32 %v346, %v464
      %v466 = vpop.f32.mrb[0].mxu0
      %467 = vmatprep.mubr.f32.mxu0 0.0
      %468 = vmatmul.mubr.f32.gmra.mrb[0].mxu0 %v368
      %v469 = vpop.f32.mrb[0].mxu0
      %v470 = vadd.f32 %v346, %v469
      %v471 = vpop.f32.mrb[0].mxu0
      %472 = vmatprep.mubr.f32.mxu0 0.0
      %473 = vmatmul.mubr.f32.gmra.mrb[0].mxu0 %v371
      %v474 = vpop.f32.mrb[0].mxu0
      %v475 = vadd.f32 %v346, %v474
      %v476 = vpop.f32.mrb[0].mxu0
      %477 = vdwg.mxu0
      %v478 = vmax.f32 %v440, 0.0
      %v479 = vmax.f32 %v445, 0.0
      %v480 = vmax.f32 %v450, 0.0
      %v481 = vmax.f32 %v455, 0.0
      %v482 = vmax.f32 %v460, 0.0
      %v483 = vmax.f32 %v465, 0.0
      %v484 = vmax.f32 %v470, 0.0
      %v485 = vmax.f32 %v475, 0.0
      %vm486 = vcmask 64512
      %487 = vst.msk [vmem:[#allocation2] sm:$0xff] %vm486, 0.0
      %vm488 = vcmask 58368
      %489 = vst.msk [vmem:[#allocation2 + $0x8] sm:$0x3] %vm488, 0.0
      %490 = vst.msk [vmem:[#allocation2 + $0x10] sm:$0xff] %vm486, 0.0
      %491 = vst.msk [vmem:[#allocation2 + $0x18] sm:$0x3] %vm488, 0.0
      %492 = vst.msk [vmem:[#allocation2 + $0x20] sm:$0xff] %vm486, 0.0
      %493 = vst.msk [vmem:[#allocation2 + $0x28] sm:$0x3] %vm488, 0.0
      %494 = vst.msk [vmem:[#allocation2 + $0x30] sm:$0xff] %vm486, 0.0
      %495 = vst.msk [vmem:[#allocation2 + $0x38] sm:$0x3] %vm488, 0.0
      %496 = vst.msk [vmem:[#allocation2 + $0x40] sm:$0xff] %vm486, 0.0
      %497 = vst.msk [vmem:[#allocation2 + $0x48] sm:$0x3] %vm488, 0.0
      %498 = vst.msk [vmem:[#allocation2 + $0x50] sm:$0xff] %vm486, 0.0
      %499 = vst.msk [vmem:[#allocation2 + $0x58] sm:$0x3] %vm488, 0.0
      %500 = vst.msk [vmem:[#allocation2 + $0x60] sm:$0xff] %vm486, 0.0
      %501 = vst.msk [vmem:[#allocation2 + $0x68] sm:$0x3] %vm488, 0.0
      %502 = vst.msk [vmem:[#allocation2 + $0x70] sm:$0xff] %vm486, 0.0
      %503 = vst.msk [vmem:[#allocation2 + $0x78] sm:$0x3] %vm488, 0.0
      %504 = vst.msk [vmem:[#allocation2 + $0x80] sm:$0xff] %vm486, 0.0
      %505 = vst.msk [vmem:[#allocation2 + $0x88] sm:$0x3] %vm488, 0.0
      %506 = vst.msk [vmem:[#allocation2 + $0x90] sm:$0xff] %vm486, 0.0
      %507 = vst.msk [vmem:[#allocation2 + $0x98] sm:$0x3] %vm488, 0.0
      %s508 = scalar_lea.vmem [#allocation2], 16
      %509 = vst.msk [vmem:[%s508 + $0x1] sm:$0xff] %vm486, %v478
      %510 = vst.msk [vmem:[%s508 + $0x11] sm:$0xff] %vm486, %v479
      %511 = vst.msk [vmem:[%s508 + $0x21] sm:$0xff] %vm486, %v480
      %512 = vst.msk [vmem:[%s508 + $0x31] sm:$0xff] %vm486, %v481
      %513 = vst.msk [vmem:[%s508 + $0x41] sm:$0xff] %vm486, %v482
      %514 = vst.msk [vmem:[%s508 + $0x51] sm:$0xff] %vm486, %v483
      %515 = vst.msk [vmem:[%s508 + $0x61] sm:$0xff] %vm486, %v484
      %516 = vst.msk [vmem:[%s508 + $0x71] sm:$0xff] %vm486, %v485
      %v517 = vld [vmem:[#allocation2] sm:$0xff]
      %v518 = vld [vmem:[#allocation2 + $0x8] sm:$0x3]
      %v519 = vld [vmem:[#allocation2 + $0x10] sm:$0xff]
      %v520 = vld [vmem:[#allocation2 + $0x18] sm:$0x3]
      %v521 = vld [vmem:[#allocation2 + $0x20] sm:$0xff]
      %v522 = vld [vmem:[#allocation2 + $0x28] sm:$0x3]
      %v523 = vld [vmem:[#allocation2 + $0x30] sm:$0xff]
      %v524 = vld [vmem:[#allocation2 + $0x38] sm:$0x3]
      %v525 = vld [vmem:[#allocation2 + $0x40] sm:$0xff]
      %v526 = vld [vmem:[#allocation2 + $0x48] sm:$0x3]
      %v527 = vld [vmem:[#allocation2 + $0x50] sm:$0xff]
      %v528 = vld [vmem:[#allocation2 + $0x58] sm:$0x3]
      %v529 = vld [vmem:[#allocation2 + $0x60] sm:$0xff]
      %v530 = vld [vmem:[#allocation2 + $0x68] sm:$0x3]
      %v531 = vld [vmem:[#allocation2 + $0x70] sm:$0xff]
      %v532 = vld [vmem:[#allocation2 + $0x78] sm:$0x3]
      %v533 = vld [vmem:[#allocation2 + $0x80] sm:$0xff]
      %v534 = vld [vmem:[#allocation2 + $0x88] sm:$0x3]
      %v535 = vld [vmem:[#allocation2 + $0x90] sm:$0xff]
      %v536 = vld [vmem:[#allocation2 + $0x98] sm:$0x3]
      %v537 = vld [vmem:[%s3] sm:$0x7]
      %v538 = vld [vmem:[%s3 + $0x4] sm:$0x7]
      %v539 = vld [vmem:[%s3 + $0x8] sm:$0x7]
      %v540 = vlaneseq
      %v541 = vshrl.u32 %v540, 7
      %v542 = vsub.s32 0, %v541
      %v543 = vrot.slane %v537, %v542
      %v544 = vmul.f32 %v517, %v543
      %v545 = vmul.f32 %v519, %v543
      %v546 = vmul.f32 %v521, %v543
      %v547 = vmul.f32 %v523, %v543
      %v548 = vmul.f32 %v525, %v543
      %v549 = vmul.f32 %v527, %v543
      %v550 = vmul.f32 %v529, %v543
      %v551 = vmul.f32 %v531, %v543
      %v552 = vadd.f32 %v544, 0.0
      %v553 = vadd.f32 %v545, 0.0
      %v554 = vadd.f32 %v546, 0.0
      %v555 = vadd.f32 %v547, 0.0
      %v556 = vadd.f32 %v548, 0.0
      %v557 = vadd.f32 %v549, 0.0
      %v558 = vadd.f32 %v550, 0.0
      %v559 = vadd.f32 %v551, 0.0
      %v560 = vlaneseq
      %v561 = vshrl.u32 %v560, 7
      %v562 = vsub.s32 1, %v561
      %v563 = vrot.slane %v537, %v562
      %v564 = vmul.f32 %v517, %v563
      %v565 = vmul.f32 %v518, %v563
      %v566 = vmul.f32 %v519, %v563
      %v567 = vmul.f32 %v520, %v563
      %v568 = vmul.f32 %v521, %v563
      %v569 = vmul.f32 %v522, %v563
      %v570 = vmul.f32 %v523, %v563
      %v571 = vmul.f32 %v524, %v563
      %v572 = vmul.f32 %v525, %v563
      %v573 = vmul.f32 %v526, %v563
      %v574 = vmul.f32 %v527, %v563
      %v575 = vmul.f32 %v528, %v563
      %v576 = vmul.f32 %v529, %v563
      %v577 = vmul.f32 %v530, %v563
      %v578 = vmul.f32 %v531, %v563
      %v579 = vmul.f32 %v532, %v563
      %vm596 = vcmask 1046528
      %v597 = vrot.slane %v564, 1
      %v598 = vrot.slane %v565, 1
      %v599 = vsel %vm596, %v597, %v598
      %v600 = vrot.slane %v566, 1
      %v601 = vrot.slane %v567, 1
      %v602 = vsel %vm596, %v600, %v601
      %v603 = vrot.slane %v568, 1
      %v604 = vrot.slane %v569, 1
      %v605 = vsel %vm596, %v603, %v604
      %v606 = vrot.slane %v570, 1
      %v607 = vrot.slane %v571, 1
      %v608 = vsel %vm596, %v606, %v607
      %v609 = vrot.slane %v572, 1
      %v610 = vrot.slane %v573, 1
      %v611 = vsel %vm596, %v609, %v610
      %v612 = vrot.slane %v574, 1
      %v613 = vrot.slane %v575, 1
      %v614 = vsel %vm596, %v612, %v613
      %v615 = vrot.slane %v576, 1
      %v616 = vrot.slane %v577, 1
      %v617 = vsel %vm596, %v615, %v616
      %v618 = vrot.slane %v578, 1
      %v619 = vrot.slane %v579, 1
      %v620 = vsel %vm596, %v618, %v619
      %v629 = vadd.f32 %v552, %v599
      %v630 = vadd.f32 %v553, %v602
      %v631 = vadd.f32 %v554, %v605
      %v632 = vadd.f32 %v555, %v608
      %v633 = vadd.f32 %v556, %v611
      %v634 = vadd.f32 %v557, %v614
      %v635 = vadd.f32 %v558, %v617
      %v636 = vadd.f32 %v559, %v620
      %v637 = vlaneseq
      %v638 = vshrl.u32 %v637, 7
      %v639 = vsub.s32 2, %v638
      %v640 = vrot.slane %v537, %v639
      %v641 = vmul.f32 %v517, %v640
      %v642 = vmul.f32 %v518, %v640
      %v643 = vmul.f32 %v519, %v640
      %v644 = vmul.f32 %v520, %v640
      %v645 = vmul.f32 %v521, %v640
      %v646 = vmul.f32 %v522, %v640
      %v647 = vmul.f32 %v523, %v640
      %v648 = vmul.f32 %v524, %v640
      %v649 = vmul.f32 %v525, %v640
      %v650 = vmul.f32 %v526, %v640
      %v651 = vmul.f32 %v527, %v640
      %v652 = vmul.f32 %v528, %v640
      %v653 = vmul.f32 %v529, %v640
      %v654 = vmul.f32 %v530, %v640
      %v655 = vmul.f32 %v531, %v640
      %v656 = vmul.f32 %v532, %v640
      %vm673 = vcmask 1045504
      %v674 = vrot.slane %v641, 2
      %v675 = vrot.slane %v642, 2
      %v676 = vsel %vm673, %v674, %v675
      %v677 = vrot.slane %v643, 2
      %v678 = vrot.slane %v644, 2
      %v679 = vsel %vm673, %v677, %v678
      %v680 = vrot.slane %v645, 2
      %v681 = vrot.slane %v646, 2
      %v682 = vsel %vm673, %v680, %v681
      %v683 = vrot.slane %v647, 2
      %v684 = vrot.slane %v648, 2
      %v685 = vsel %vm673, %v683, %v684
      %v686 = vrot.slane %v649, 2
      %v687 = vrot.slane %v650, 2
      %v688 = vsel %vm673, %v686, %v687
      %v689 = vrot.slane %v651, 2
      %v690 = vrot.slane %v652, 2
      %v691 = vsel %vm673, %v689, %v690
      %v692 = vrot.slane %v653, 2
      %v693 = vrot.slane %v654, 2
      %v694 = vsel %vm673, %v692, %v693
      %v695 = vrot.slane %v655, 2
      %v696 = vrot.slane %v656, 2
      %v697 = vsel %vm673, %v695, %v696
      %v706 = vadd.f32 %v629, %v676
      %v707 = vadd.f32 %v630, %v679
      %v708 = vadd.f32 %v631, %v682
      %v709 = vadd.f32 %v632, %v685
      %v710 = vadd.f32 %v633, %v688
      %v711 = vadd.f32 %v634, %v691
      %v712 = vadd.f32 %v635, %v694
      %v713 = vadd.f32 %v636, %v697
      %v714 = vlaneseq
      %v715 = vshrl.u32 %v714, 7
      %v716 = vsub.s32 0, %v715
      %v717 = vrot.slane %v538, %v716
      %v718 = vmul.f32 %v519, %v717
      %v719 = vmul.f32 %v521, %v717
      %v720 = vmul.f32 %v523, %v717
      %v721 = vmul.f32 %v525, %v717
      %v722 = vmul.f32 %v527, %v717
      %v723 = vmul.f32 %v529, %v717
      %v724 = vmul.f32 %v531, %v717
      %v725 = vmul.f32 %v533, %v717
      %v726 = vadd.f32 %v706, %v718
      %v727 = vadd.f32 %v707, %v719
      %v728 = vadd.f32 %v708, %v720
      %v729 = vadd.f32 %v709, %v721
      %v730 = vadd.f32 %v710, %v722
      %v731 = vadd.f32 %v711, %v723
      %v732 = vadd.f32 %v712, %v724
      %v733 = vadd.f32 %v713, %v725
      %v734 = vlaneseq
      %v735 = vshrl.u32 %v734, 7
      %v736 = vsub.s32 1, %v735
      %v737 = vrot.slane %v538, %v736
      %v738 = vmul.f32 %v519, %v737
      %v739 = vmul.f32 %v520, %v737
      %v740 = vmul.f32 %v521, %v737
      %v741 = vmul.f32 %v522, %v737
      %v742 = vmul.f32 %v523, %v737
      %v743 = vmul.f32 %v524, %v737
      %v744 = vmul.f32 %v525, %v737
      %v745 = vmul.f32 %v526, %v737
      %v746 = vmul.f32 %v527, %v737
      %v747 = vmul.f32 %v528, %v737
      %v748 = vmul.f32 %v529, %v737
      %v749 = vmul.f32 %v530, %v737
      %v750 = vmul.f32 %v531, %v737
      %v751 = vmul.f32 %v532, %v737
      %v752 = vmul.f32 %v533, %v737
      %v753 = vmul.f32 %v534, %v737
      %v770 = vrot.slane %v738, 1
      %v771 = vrot.slane %v739, 1
      %v772 = vsel %vm596, %v770, %v771
      %v773 = vrot.slane %v740, 1
      %v774 = vrot.slane %v741, 1
      %v775 = vsel %vm596, %v773, %v774
      %v776 = vrot.slane %v742, 1
      %v777 = vrot.slane %v743, 1
      %v778 = vsel %vm596, %v776, %v777
      %v779 = vrot.slane %v744, 1
      %v780 = vrot.slane %v745, 1
      %v781 = vsel %vm596, %v779, %v780
      %v782 = vrot.slane %v746, 1
      %v783 = vrot.slane %v747, 1
      %v784 = vsel %vm596, %v782, %v783
      %v785 = vrot.slane %v748, 1
      %v786 = vrot.slane %v749, 1
      %v787 = vsel %vm596, %v785, %v786
      %v788 = vrot.slane %v750, 1
      %v789 = vrot.slane %v751, 1
      %v790 = vsel %vm596, %v788, %v789
      %v791 = vrot.slane %v752, 1
      %v792 = vrot.slane %v753, 1
      %v793 = vsel %vm596, %v791, %v792
      %v802 = vadd.f32 %v726, %v772
      %v803 = vadd.f32 %v727, %v775
      %v804 = vadd.f32 %v728, %v778
      %v805 = vadd.f32 %v729, %v781
      %v806 = vadd.f32 %v730, %v784
      %v807 = vadd.f32 %v731, %v787
      %v808 = vadd.f32 %v732, %v790
      %v809 = vadd.f32 %v733, %v793
      %v810 = vlaneseq
      %v811 = vshrl.u32 %v810, 7
      %v812 = vsub.s32 2, %v811
      %v813 = vrot.slane %v538, %v812
      %v814 = vmul.f32 %v519, %v813
      %v815 = vmul.f32 %v520, %v813
      %v816 = vmul.f32 %v521, %v813
      %v817 = vmul.f32 %v522, %v813
      %v818 = vmul.f32 %v523, %v813
      %v819 = vmul.f32 %v524, %v813
      %v820 = vmul.f32 %v525, %v813
      %v821 = vmul.f32 %v526, %v813
      %v822 = vmul.f32 %v527, %v813
      %v823 = vmul.f32 %v528, %v813
      %v824 = vmul.f32 %v529, %v813
      %v825 = vmul.f32 %v530, %v813
      %v826 = vmul.f32 %v531, %v813
      %v827 = vmul.f32 %v532, %v813
      %v828 = vmul.f32 %v533, %v813
      %v829 = vmul.f32 %v534, %v813
      %v846 = vrot.slane %v814, 2
      %v847 = vrot.slane %v815, 2
      %v848 = vsel %vm673, %v846, %v847
      %v849 = vrot.slane %v816, 2
      %v850 = vrot.slane %v817, 2
      %v851 = vsel %vm673, %v849, %v850
      %v852 = vrot.slane %v818, 2
      %v853 = vrot.slane %v819, 2
      %v854 = vsel %vm673, %v852, %v853
      %v855 = vrot.slane %v820, 2
      %v856 = vrot.slane %v821, 2
      %v857 = vsel %vm673, %v855, %v856
      %v858 = vrot.slane %v822, 2
      %v859 = vrot.slane %v823, 2
      %v860 = vsel %vm673, %v858, %v859
      %v861 = vrot.slane %v824, 2
      %v862 = vrot.slane %v825, 2
      %v863 = vsel %vm673, %v861, %v862
      %v864 = vrot.slane %v826, 2
      %v865 = vrot.slane %v827, 2
      %v866 = vsel %vm673, %v864, %v865
      %v867 = vrot.slane %v828, 2
      %v868 = vrot.slane %v829, 2
      %v869 = vsel %vm673, %v867, %v868
      %v878 = vadd.f32 %v802, %v848
      %v879 = vadd.f32 %v803, %v851
      %v880 = vadd.f32 %v804, %v854
      %v881 = vadd.f32 %v805, %v857
      %v882 = vadd.f32 %v806, %v860
      %v883 = vadd.f32 %v807, %v863
      %v884 = vadd.f32 %v808, %v866
      %v885 = vadd.f32 %v809, %v869
      %v886 = vlaneseq
      %v887 = vshrl.u32 %v886, 7
      %v888 = vsub.s32 0, %v887
      %v889 = vrot.slane %v539, %v888
      %v890 = vmul.f32 %v521, %v889
      %v891 = vmul.f32 %v523, %v889
      %v892 = vmul.f32 %v525, %v889
      %v893 = vmul.f32 %v527, %v889
      %v894 = vmul.f32 %v529, %v889
      %v895 = vmul.f32 %v531, %v889
      %v896 = vmul.f32 %v533, %v889
      %v897 = vmul.f32 %v535, %v889
      %v898 = vadd.f32 %v878, %v890
      %v899 = vadd.f32 %v879, %v891
      %v900 = vadd.f32 %v880, %v892
      %v901 = vadd.f32 %v881, %v893
      %v902 = vadd.f32 %v882, %v894
      %v903 = vadd.f32 %v883, %v895
      %v904 = vadd.f32 %v884, %v896
      %v905 = vadd.f32 %v885, %v897
      %v906 = vlaneseq
      %v907 = vshrl.u32 %v906, 7
      %v908 = vsub.s32 1, %v907
      %v909 = vrot.slane %v539, %v908
      %v910 = vmul.f32 %v521, %v909
      %v911 = vmul.f32 %v522, %v909
      %v912 = vmul.f32 %v523, %v909
      %v913 = vmul.f32 %v524, %v909
      %v914 = vmul.f32 %v525, %v909
      %v915 = vmul.f32 %v526, %v909
      %v916 = vmul.f32 %v527, %v909
      %v917 = vmul.f32 %v528, %v909
      %v918 = vmul.f32 %v529, %v909
      %v919 = vmul.f32 %v530, %v909
      %v920 = vmul.f32 %v531, %v909
      %v921 = vmul.f32 %v532, %v909
      %v922 = vmul.f32 %v533, %v909
      %v923 = vmul.f32 %v534, %v909
      %v924 = vmul.f32 %v535, %v909
      %v925 = vmul.f32 %v536, %v909
      %v942 = vrot.slane %v910, 1
      %v943 = vrot.slane %v911, 1
      %v944 = vsel %vm596, %v942, %v943
      %v945 = vrot.slane %v912, 1
      %v946 = vrot.slane %v913, 1
      %v947 = vsel %vm596, %v945, %v946
      %v948 = vrot.slane %v914, 1
      %v949 = vrot.slane %v915, 1
      %v950 = vsel %vm596, %v948, %v949
      %v951 = vrot.slane %v916, 1
      %v952 = vrot.slane %v917, 1
      %v953 = vsel %vm596, %v951, %v952
      %v954 = vrot.slane %v918, 1
      %v955 = vrot.slane %v919, 1
      %v956 = vsel %vm596, %v954, %v955
      %v957 = vrot.slane %v920, 1
      %v958 = vrot.slane %v921, 1
      %v959 = vsel %vm596, %v957, %v958
      %v960 = vrot.slane %v922, 1
      %v961 = vrot.slane %v923, 1
      %v962 = vsel %vm596, %v960, %v961
      %v963 = vrot.slane %v924, 1
      %v964 = vrot.slane %v925, 1
      %v965 = vsel %vm596, %v963, %v964
      %v974 = vadd.f32 %v898, %v944
      %v975 = vadd.f32 %v899, %v947
      %v976 = vadd.f32 %v900, %v950
      %v977 = vadd.f32 %v901, %v953
      %v978 = vadd.f32 %v902, %v956
      %v979 = vadd.f32 %v903, %v959
      %v980 = vadd.f32 %v904, %v962
      %v981 = vadd.f32 %v905, %v965
      %v982 = vlaneseq
      %v983 = vshrl.u32 %v982, 7
      %v984 = vsub.s32 2, %v983
      %v985 = vrot.slane %v539, %v984
      %v986 = vmul.f32 %v521, %v985
      %v987 = vmul.f32 %v522, %v985
      %v988 = vmul.f32 %v523, %v985
      %v989 = vmul.f32 %v524, %v985
      %v990 = vmul.f32 %v525, %v985
      %v991 = vmul.f32 %v526, %v985
      %v992 = vmul.f32 %v527, %v985
      %v993 = vmul.f32 %v528, %v985
      %v994 = vmul.f32 %v529, %v985
      %v995 = vmul.f32 %v530, %v985
      %v996 = vmul.f32 %v531, %v985
      %v997 = vmul.f32 %v532, %v985
      %v998 = vmul.f32 %v533, %v985
      %v999 = vmul.f32 %v534, %v985
      %v1000 = vmul.f32 %v535, %v985
      %v1001 = vmul.f32 %v536, %v985
      %v1018 = vrot.slane %v986, 2
      %v1019 = vrot.slane %v987, 2
      %v1020 = vsel %vm673, %v1018, %v1019
      %v1021 = vrot.slane %v988, 2
      %v1022 = vrot.slane %v989, 2
      %v1023 = vsel %vm673, %v1021, %v1022
      %v1024 = vrot.slane %v990, 2
      %v1025 = vrot.slane %v991, 2
      %v1026 = vsel %vm673, %v1024, %v1025
      %v1027 = vrot.slane %v992, 2
      %v1028 = vrot.slane %v993, 2
      %v1029 = vsel %vm673, %v1027, %v1028
      %v1030 = vrot.slane %v994, 2
      %v1031 = vrot.slane %v995, 2
      %v1032 = vsel %vm673, %v1030, %v1031
      %v1033 = vrot.slane %v996, 2
      %v1034 = vrot.slane %v997, 2
      %v1035 = vsel %vm673, %v1033, %v1034
      %v1036 = vrot.slane %v998, 2
      %v1037 = vrot.slane %v999, 2
      %v1038 = vsel %vm673, %v1036, %v1037
      %v1039 = vrot.slane %v1000, 2
      %v1040 = vrot.slane %v1001, 2
      %v1041 = vsel %vm673, %v1039, %v1040
      %v1050 = vadd.f32 %v974, %v1020
      %v1051 = vadd.f32 %v975, %v1023
      %v1052 = vadd.f32 %v976, %v1026
      %v1053 = vadd.f32 %v977, %v1029
      %v1054 = vadd.f32 %v978, %v1032
      %v1055 = vadd.f32 %v979, %v1035
      %v1056 = vadd.f32 %v980, %v1038
      %v1057 = vadd.f32 %v981, %v1041
      %v1058 = vld [vmem:[%s4] sm:$0xff]
      %v1059 = vld [vmem:[%s5] sm:$0x1]
      %v1061 = vlaneseq
      %v1062 = vshrl.u32 %v1061, 7
      %v1063 = vsub.s32 0, %v1062
      %v1064 = vrot.slane %v1059, %v1063
      %v1067 = vsel %vm486, %v1050, 0
      %v1070 = vsel %vm486, %v1051, 0
      %v1073 = vsel %vm486, %v1052, 0
      %v1076 = vsel %vm486, %v1053, 0
      %v1079 = vsel %vm486, %v1054, 0
      %v1082 = vsel %vm486, %v1055, 0
      %v1085 = vsel %vm486, %v1056, 0
      %v1088 = vsel %vm486, %v1057, 0
      %1090 = vmatprep.subr.mxu0 0.0
      %1091 = vmatpush1.msra.mxu0 %v1058
      %1092 = vmatprep.subr.mxu0 0.0
      %1093 = vmatpush1.msra.mxu0 0.0
      %1094 = vmatprep.subr.mxu0 0.0
      %1095 = vmatpush1.msra.mxu0 0.0
      %1096 = vmatprep.subr.mxu0 0.0
      %1097 = vmatpush1.msra.mxu0 0.0
      %1098 = vmatprep.subr.mxu0 0.0
      %1099 = vmatpush1.msra.mxu0 0.0
      %1100 = vmatprep.subr.mxu0 0.0
      %1101 = vmatpush1.msra.mxu0 0.0
      %1102 = vmatprep.subr.mxu0 0.0
      %1103 = vmatpush1.msra.mxu0 0.0
      %1104 = vmatprep.subr.mxu0 0.0
      %1105 = vmatpush1.msra.mxu0 0.0
      %1106 = vmatprep.subr.mxu0 0.0
      %1107 = vmatpush1.msra.mxu0 0.0
      %1108 = vmatprep.subr.mxu0 0.0
      %1109 = vmatpush1.msra.mxu0 0.0
      %1110 = vmatprep.subr.mxu0 0.0
      %1111 = vmatpush1.msra.mxu0 0.0
      %1112 = vmatprep.subr.mxu0 0.0
      %1113 = vmatpush1.msra.mxu0 0.0
      %1114 = vmatprep.subr.mxu0 0.0
      %1115 = vmatpush1.msra.mxu0 0.0
      %1116 = vmatprep.subr.mxu0 0.0
      %1117 = vmatpush1.msra.mxu0 0.0
      %1118 = vmatprep.subr.mxu0 0.0
      %1119 = vmatpush1.msra.mxu0 0.0
      %1120 = vmatprep.subr.mxu0 0.0
      %1121 = vmatpush1.msra.mxu0 0.0
      %1122 = vmatprep.subr.mxu0 0.0
      %1123 = vmatpush1.msra.mxu0 0.0
      %1124 = vmatprep.subr.mxu0 0.0
      %1125 = vmatpush1.msra.mxu0 0.0
      %1126 = vmatprep.subr.mxu0 0.0
      %1127 = vmatpush1.msra.mxu0 0.0
      %1128 = vmatprep.subr.mxu0 0.0
      %1129 = vmatpush1.msra.mxu0 0.0
      %1130 = vmatprep.subr.mxu0 0.0
      %1131 = vmatpush1.msra.mxu0 0.0
      %1132 = vmatprep.subr.mxu0 0.0
      %1133 = vmatpush1.msra.mxu0 0.0
      %1134 = vmatprep.subr.mxu0 0.0
      %1135 = vmatpush1.msra.mxu0 0.0
      %1136 = vmatprep.subr.mxu0 0.0
      %1137 = vmatpush1.msra.mxu0 0.0
      %1138 = vmatprep.subr.mxu0 0.0
      %1139 = vmatpush1.msra.mxu0 0.0
      %1140 = vmatprep.subr.mxu0 0.0
      %1141 = vmatpush1.msra.mxu0 0.0
      %1142 = vmatprep.subr.mxu0 0.0
      %1143 = vmatpush1.msra.mxu0 0.0
      %1144 = vmatprep.subr.mxu0 0.0
      %1145 = vmatpush1.msra.mxu0 0.0
      %1146 = vmatprep.subr.mxu0 0.0
      %1147 = vmatpush1.msra.mxu0 0.0
      %1148 = vmatprep.subr.mxu0 0.0
      %1149 = vmatpush1.msra.mxu0 0.0
      %1150 = vmatprep.subr.mxu0 0.0
      %1151 = vmatpush1.msra.mxu0 0.0
      %1152 = vmatprep.subr.mxu0 0.0
      %1153 = vmatpush1.msra.mxu0 0.0
      %1154 = vmatprep.mubr.f32.mxu0 0.0
      %1155 = vmatmul.mubr.f32.gmra.mrb[0].mxu0 %v1067
      %v1156 = vpop.f32.mrb[0].mxu0
      %v1157 = vadd.f32 %v1064, %v1156
      %v1158 = vpop.f32.mrb[0].mxu0
      %1159 = vmatprep.mubr.f32.mxu0 0.0
      %1160 = vmatmul.mubr.f32.gmra.mrb[0].mxu0 %v1070
      %v1161 = vpop.f32.mrb[0].mxu0
      %v1162 = vadd.f32 %v1064, %v1161
      %v1163 = vpop.f32.mrb[0].mxu0
      %1164 = vmatprep.mubr.f32.mxu0 0.0
      %1165 = vmatmul.mubr.f32.gmra.mrb[0].mxu0 %v1073
      %v1166 = vpop.f32.mrb[0].mxu0
      %v1167 = vadd.f32 %v1064, %v1166
      %v1168 = vpop.f32.mrb[0].mxu0
      %1169 = vmatprep.mubr.f32.mxu0 0.0
      %1170 = vmatmul.mubr.f32.gmra.mrb[0].mxu0 %v1076
      %v1171 = vpop.f32.mrb[0].mxu0
      %v1172 = vadd.f32 %v1064, %v1171
      %v1173 = vpop.f32.mrb[0].mxu0
      %1174 = vmatprep.mubr.f32.mxu0 0.0
      %1175 = vmatmul.mubr.f32.gmra.mrb[0].mxu0 %v1079
      %v1176 = vpop.f32.mrb[0].mxu0
      %v1177 = vadd.f32 %v1064, %v1176
      %v1178 = vpop.f32.mrb[0].mxu0
      %1179 = vmatprep.mubr.f32.mxu0 0.0
      %1180 = vmatmul.mubr.f32.gmra.mrb[0].mxu0 %v1082
      %v1181 = vpop.f32.mrb[0].mxu0
      %v1182 = vadd.f32 %v1064, %v1181
      %v1183 = vpop.f32.mrb[0].mxu0
      %1184 = vmatprep.mubr.f32.mxu0 0.0
      %1185 = vmatmul.mubr.f32.gmra.mrb[0].mxu0 %v1085
      %v1186 = vpop.f32.mrb[0].mxu0
      %v1187 = vadd.f32 %v1064, %v1186
      %v1188 = vpop.f32.mrb[0].mxu0
      %1189 = vmatprep.mubr.f32.mxu0 0.0
      %1190 = vmatmul.mubr.f32.gmra.mrb[0].mxu0 %v1088
      %v1191 = vpop.f32.mrb[0].mxu0
      %v1192 = vadd.f32 %v1064, %v1191
      %v1193 = vpop.f32.mrb[0].mxu0
      %1194 = vdwg.mxu0
      %v1195 = vmax.f32 %v1157, 0.0
      %v1196 = vmax.f32 %v1162, 0.0
      %v1197 = vmax.f32 %v1167, 0.0
      %v1198 = vmax.f32 %v1172, 0.0
      %v1199 = vmax.f32 %v1177, 0.0
      %v1200 = vmax.f32 %v1182, 0.0
      %v1201 = vmax.f32 %v1187, 0.0
      %v1202 = vmax.f32 %v1192, 0.0
      %1203 = vst.msk [vmem:[%s508 + $0x1] sm:$0xff] %vm486, %v1195
      %1204 = vst.msk [vmem:[%s508 + $0x11] sm:$0xff] %vm486, %v1196
      %1205 = vst.msk [vmem:[%s508 + $0x21] sm:$0xff] %vm486, %v1197
      %1206 = vst.msk [vmem:[%s508 + $0x31] sm:$0xff] %vm486, %v1198
      %1207 = vst.msk [vmem:[%s508 + $0x41] sm:$0xff] %vm486, %v1199
      %1208 = vst.msk [vmem:[%s508 + $0x51] sm:$0xff] %vm486, %v1200
      %1209 = vst.msk [vmem:[%s508 + $0x61] sm:$0xff] %vm486, %v1201
      %1210 = vst.msk [vmem:[%s508 + $0x71] sm:$0xff] %vm486, %v1202
      %v1211 = vld [vmem:[#allocation2] sm:$0xff]
      %v1212 = vld [vmem:[#allocation2 + $0x8] sm:$0x3]
      %v1213 = vld [vmem:[#allocation2 + $0x10] sm:$0xff]
      %v1214 = vld [vmem:[#allocation2 + $0x18] sm:$0x3]
      %v1215 = vld [vmem:[#allocation2 + $0x20] sm:$0xff]
      %v1216 = vld [vmem:[#allocation2 + $0x28] sm:$0x3]
      %v1217 = vld [vmem:[#allocation2 + $0x30] sm:$0xff]
      %v1218 = vld [vmem:[#allocation2 + $0x38] sm:$0x3]
      %v1219 = vld [vmem:[#allocation2 + $0x40] sm:$0xff]
      %v1220 = vld [vmem:[#allocation2 + $0x48] sm:$0x3]
      %v1221 = vld [vmem:[#allocation2 + $0x50] sm:$0xff]
      %v1222 = vld [vmem:[#allocation2 + $0x58] sm:$0x3]
      %v1223 = vld [vmem:[#allocation2 + $0x60] sm:$0xff]
      %v1224 = vld [vmem:[#allocation2 + $0x68] sm:$0x3]
      %v1225 = vld [vmem:[#allocation2 + $0x70] sm:$0xff]
      %v1226 = vld [vmem:[#allocation2 + $0x78] sm:$0x3]
      %v1227 = vld [vmem:[#allocation2 + $0x80] sm:$0xff]
      %v1228 = vld [vmem:[#allocation2 + $0x88] sm:$0x3]
      %v1229 = vld [vmem:[#allocation2 + $0x90] sm:$0xff]
      %v1230 = vld [vmem:[#allocation2 + $0x98] sm:$0x3]
      %v1231 = vld [vmem:[%s6] sm:$0x7]
      %v1232 = vld [vmem:[%s6 + $0x4] sm:$0x7]
      %v1233 = vld [vmem:[%s6 + $0x8] sm:$0x7]
      %v1234 = vlaneseq
      %v1235 = vshrl.u32 %v1234, 7
      %v1236 = vsub.s32 0, %v1235
      %v1237 = vrot.slane %v1231, %v1236
      %v1238 = vmul.f32 %v1211, %v1237
      %v1239 = vmul.f32 %v1213, %v1237
      %v1240 = vmul.f32 %v1215, %v1237
      %v1241 = vmul.f32 %v1217, %v1237
      %v1242 = vmul.f32 %v1219, %v1237
      %v1243 = vmul.f32 %v1221, %v1237
      %v1244 = vmul.f32 %v1223, %v1237
      %v1245 = vmul.f32 %v1225, %v1237
      %v1246 = vadd.f32 %v1238, 0.0
      %v1247 = vadd.f32 %v1239, 0.0
      %v1248 = vadd.f32 %v1240, 0.0
      %v1249 = vadd.f32 %v1241, 0.0
      %v1250 = vadd.f32 %v1242, 0.0
      %v1251 = vadd.f32 %v1243, 0.0
      %v1252 = vadd.f32 %v1244, 0.0
      %v1253 = vadd.f32 %v1245, 0.0
      %v1254 = vlaneseq
      %v1255 = vshrl.u32 %v1254, 7
      %v1256 = vsub.s32 1, %v1255
      %v1257 = vrot.slane %v1231, %v1256
      %v1258 = vmul.f32 %v1211, %v1257
      %v1259 = vmul.f32 %v1212, %v1257
      %v1260 = vmul.f32 %v1213, %v1257
      %v1261 = vmul.f32 %v1214, %v1257
      %v1262 = vmul.f32 %v1215, %v1257
      %v1263 = vmul.f32 %v1216, %v1257
      %v1264 = vmul.f32 %v1217, %v1257
      %v1265 = vmul.f32 %v1218, %v1257
      %v1266 = vmul.f32 %v1219, %v1257
      %v1267 = vmul.f32 %v1220, %v1257
      %v1268 = vmul.f32 %v1221, %v1257
      %v1269 = vmul.f32 %v1222, %v1257
      %v1270 = vmul.f32 %v1223, %v1257
      %v1271 = vmul.f32 %v1224, %v1257
      %v1272 = vmul.f32 %v1225, %v1257
      %v1273 = vmul.f32 %v1226, %v1257
      %v1290 = vrot.slane %v1258, 1
      %v1291 = vrot.slane %v1259, 1
      %v1292 = vsel %vm596, %v1290, %v1291
      %v1293 = vrot.slane %v1260, 1
      %v1294 = vrot.slane %v1261, 1
      %v1295 = vsel %vm596, %v1293, %v1294
      %v1296 = vrot.slane %v1262, 1
      %v1297 = vrot.slane %v1263, 1
      %v1298 = vsel %vm596, %v1296, %v1297
      %v1299 = vrot.slane %v1264, 1
      %v1300 = vrot.slane %v1265, 1
      %v1301 = vsel %vm596, %v1299, %v1300
      %v1302 = vrot.slane %v1266, 1
      %v1303 = vrot.slane %v1267, 1
      %v1304 = vsel %vm596, %v1302, %v1303
      %v1305 = vrot.slane %v1268, 1
      %v1306 = vrot.slane %v1269, 1
      %v1307 = vsel %vm596, %v1305, %v1306
      %v1308 = vrot.slane %v1270, 1
      %v1309 = vrot.slane %v1271, 1
      %v1310 = vsel %vm596, %v1308, %v1309
      %v1311 = vrot.slane %v1272, 1
      %v1312 = vrot.slane %v1273, 1
      %v1313 = vsel %vm596, %v1311, %v1312
      %v1322 = vadd.f32 %v1246, %v1292
      %v1323 = vadd.f32 %v1247, %v1295
      %v1324 = vadd.f32 %v1248, %v1298
      %v1325 = vadd.f32 %v1249, %v1301
      %v1326 = vadd.f32 %v1250, %v1304
      %v1327 = vadd.f32 %v1251, %v1307
      %v1328 = vadd.f32 %v1252, %v1310
      %v1329 = vadd.f32 %v1253, %v1313
      %v1330 = vlaneseq
      %v1331 = vshrl.u32 %v1330, 7
      %v1332 = vsub.s32 2, %v1331
      %v1333 = vrot.slane %v1231, %v1332
      %v1334 = vmul.f32 %v1211, %v1333
      %v1335 = vmul.f32 %v1212, %v1333
      %v1336 = vmul.f32 %v1213, %v1333
      %v1337 = vmul.f32 %v1214, %v1333
      %v1338 = vmul.f32 %v1215, %v1333
      %v1339 = vmul.f32 %v1216, %v1333
      %v1340 = vmul.f32 %v1217, %v1333
      %v1341 = vmul.f32 %v1218, %v1333
      %v1342 = vmul.f32 %v1219, %v1333
      %v1343 = vmul.f32 %v1220, %v1333
      %v1344 = vmul.f32 %v1221, %v1333
      %v1345 = vmul.f32 %v1222, %v1333
      %v1346 = vmul.f32 %v1223, %v1333
      %v1347 = vmul.f32 %v1224, %v1333
      %v1348 = vmul.f32 %v1225, %v1333
      %v1349 = vmul.f32 %v1226, %v1333
      %v1366 = vrot.slane %v1334, 2
      %v1367 = vrot.slane %v1335, 2
      %v1368 = vsel %vm673, %v1366, %v1367
      %v1369 = vrot.slane %v1336, 2
      %v1370 = vrot.slane %v1337, 2
      %v1371 = vsel %vm673, %v1369, %v1370
      %v1372 = vrot.slane %v1338, 2
      %v1373 = vrot.slane %v1339, 2
      %v1374 = vsel %vm673, %v1372, %v1373
      %v1375 = vrot.slane %v1340, 2
      %v1376 = vrot.slane %v1341, 2
      %v1377 = vsel %vm673, %v1375, %v1376
      %v1378 = vrot.slane %v1342, 2
      %v1379 = vrot.slane %v1343, 2
      %v1380 = vsel %vm673, %v1378, %v1379
      %v1381 = vrot.slane %v1344, 2
      %v1382 = vrot.slane %v1345, 2
      %v1383 = vsel %vm673, %v1381, %v1382
      %v1384 = vrot.slane %v1346, 2
      %v1385 = vrot.slane %v1347, 2
      %v1386 = vsel %vm673, %v1384, %v1385
      %v1387 = vrot.slane %v1348, 2
      %v1388 = vrot.slane %v1349, 2
      %v1389 = vsel %vm673, %v1387, %v1388
      %v1398 = vadd.f32 %v1322, %v1368
      %v1399 = vadd.f32 %v1323, %v1371
      %v1400 = vadd.f32 %v1324, %v1374
      %v1401 = vadd.f32 %v1325, %v1377
      %v1402 = vadd.f32 %v1326, %v1380
      %v1403 = vadd.f32 %v1327, %v1383
      %v1404 = vadd.f32 %v1328, %v1386
      %v1405 = vadd.f32 %v1329, %v1389
      %v1406 = vlaneseq
      %v1407 = vshrl.u32 %v1406, 7
      %v1408 = vsub.s32 0, %v1407
      %v1409 = vrot.slane %v1232, %v1408
      %v1410 = vmul.f32 %v1213, %v1409
      %v1411 = vmul.f32 %v1215, %v1409
      %v1412 = vmul.f32 %v1217, %v1409
      %v1413 = vmul.f32 %v1219, %v1409
      %v1414 = vmul.f32 %v1221, %v1409
      %v1415 = vmul.f32 %v1223, %v1409
      %v1416 = vmul.f32 %v1225, %v1409
      %v1417 = vmul.f32 %v1227, %v1409
      %v1418 = vadd.f32 %v1398, %v1410
      %v1419 = vadd.f32 %v1399, %v1411
      %v1420 = vadd.f32 %v1400, %v1412
      %v1421 = vadd.f32 %v1401, %v1413
      %v1422 = vadd.f32 %v1402, %v1414
      %v1423 = vadd.f32 %v1403, %v1415
      %v1424 = vadd.f32 %v1404, %v1416
      %v1425 = vadd.f32 %v1405, %v1417
      %v1426 = vlaneseq
      %v1427 = vshrl.u32 %v1426, 7
      %v1428 = vsub.s32 1, %v1427
      %v1429 = vrot.slane %v1232, %v1428
      %v1430 = vmul.f32 %v1213, %v1429
      %v1431 = vmul.f32 %v1214, %v1429
      %v1432 = vmul.f32 %v1215, %v1429
      %v1433 = vmul.f32 %v1216, %v1429
      %v1434 = vmul.f32 %v1217, %v1429
      %v1435 = vmul.f32 %v1218, %v1429
      %v1436 = vmul.f32 %v1219, %v1429
      %v1437 = vmul.f32 %v1220, %v1429
      %v1438 = vmul.f32 %v1221, %v1429
      %v1439 = vmul.f32 %v1222, %v1429
      %v1440 = vmul.f32 %v1223, %v1429
      %v1441 = vmul.f32 %v1224, %v1429
      %v1442 = vmul.f32 %v1225, %v1429
      %v1443 = vmul.f32 %v1226, %v1429
      %v1444 = vmul.f32 %v1227, %v1429
      %v1445 = vmul.f32 %v1228, %v1429
      %v1462 = vrot.slane %v1430, 1
      %v1463 = vrot.slane %v1431, 1
      %v1464 = vsel %vm596, %v1462, %v1463
      %v1465 = vrot.slane %v1432, 1
      %v1466 = vrot.slane %v1433, 1
      %v1467 = vsel %vm596, %v1465, %v1466
      %v1468 = vrot.slane %v1434, 1
      %v1469 = vrot.slane %v1435, 1
      %v1470 = vsel %vm596, %v1468, %v1469
      %v1471 = vrot.slane %v1436, 1
      %v1472 = vrot.slane %v1437, 1
      %v1473 = vsel %vm596, %v1471, %v1472
      %v1474 = vrot.slane %v1438, 1
      %v1475 = vrot.slane %v1439, 1
      %v1476 = vsel %vm596, %v1474, %v1475
      %v1477 = vrot.slane %v1440, 1
      %v1478 = vrot.slane %v1441, 1
      %v1479 = vsel %vm596, %v1477, %v1478
      %v1480 = vrot.slane %v1442, 1
      %v1481 = vrot.slane %v1443, 1
      %v1482 = vsel %vm596, %v1480, %v1481
      %v1483 = vrot.slane %v1444, 1
      %v1484 = vrot.slane %v1445, 1
      %v1485 = vsel %vm596, %v1483, %v1484
      %v1494 = vadd.f32 %v1418, %v1464
      %v1495 = vadd.f32 %v1419, %v1467
      %v1496 = vadd.f32 %v1420, %v1470
      %v1497 = vadd.f32 %v1421, %v1473
      %v1498 = vadd.f32 %v1422, %v1476
      %v1499 = vadd.f32 %v1423, %v1479
      %v1500 = vadd.f32 %v1424, %v1482
      %v1501 = vadd.f32 %v1425, %v1485
      %v1502 = vlaneseq
      %v1503 = vshrl.u32 %v1502, 7
      %v1504 = vsub.s32 2, %v1503
      %v1505 = vrot.slane %v1232, %v1504
      %v1506 = vmul.f32 %v1213, %v1505
      %v1507 = vmul.f32 %v1214, %v1505
      %v1508 = vmul.f32 %v1215, %v1505
      %v1509 = vmul.f32 %v1216, %v1505
      %v1510 = vmul.f32 %v1217, %v1505
      %v1511 = vmul.f32 %v1218, %v1505
      %v1512 = vmul.f32 %v1219, %v1505
      %v1513 = vmul.f32 %v1220, %v1505
      %v1514 = vmul.f32 %v1221, %v1505
      %v1515 = vmul.f32 %v1222, %v1505
      %v1516 = vmul.f32 %v1223, %v1505
      %v1517 = vmul.f32 %v1224, %v1505
      %v1518 = vmul.f32 %v1225, %v1505
      %v1519 = vmul.f32 %v1226, %v1505
      %v1520 = vmul.f32 %v1227, %v1505
      %v1521 = vmul.f32 %v1228, %v1505
      %v1538 = vrot.slane %v1506, 2
      %v1539 = vrot.slane %v1507, 2
      %v1540 = vsel %vm673, %v1538, %v1539
      %v1541 = vrot.slane %v1508, 2
      %v1542 = vrot.slane %v1509, 2
      %v1543 = vsel %vm673, %v1541, %v1542
      %v1544 = vrot.slane %v1510, 2
      %v1545 = vrot.slane %v1511, 2
      %v1546 = vsel %vm673, %v1544, %v1545
      %v1547 = vrot.slane %v1512, 2
      %v1548 = vrot.slane %v1513, 2
      %v1549 = vsel %vm673, %v1547, %v1548
      %v1550 = vrot.slane %v1514, 2
      %v1551 = vrot.slane %v1515, 2
      %v1552 = vsel %vm673, %v1550, %v1551
      %v1553 = vrot.slane %v1516, 2
      %v1554 = vrot.slane %v1517, 2
      %v1555 = vsel %vm673, %v1553, %v1554
      %v1556 = vrot.slane %v1518, 2
      %v1557 = vrot.slane %v1519, 2
      %v1558 = vsel %vm673, %v1556, %v1557
      %v1559 = vrot.slane %v1520, 2
      %v1560 = vrot.slane %v1521, 2
      %v1561 = vsel %vm673, %v1559, %v1560
      %v1570 = vadd.f32 %v1494, %v1540
      %v1571 = vadd.f32 %v1495, %v1543
      %v1572 = vadd.f32 %v1496, %v1546
      %v1573 = vadd.f32 %v1497, %v1549
      %v1574 = vadd.f32 %v1498, %v1552
      %v1575 = vadd.f32 %v1499, %v1555
      %v1576 = vadd.f32 %v1500, %v1558
      %v1577 = vadd.f32 %v1501, %v1561
      %v1578 = vlaneseq
      %v1579 = vshrl.u32 %v1578, 7
      %v1580 = vsub.s32 0, %v1579
      %v1581 = vrot.slane %v1233, %v1580
      %v1582 = vmul.f32 %v1215, %v1581
      %v1583 = vmul.f32 %v1217, %v1581
      %v1584 = vmul.f32 %v1219, %v1581
      %v1585 = vmul.f32 %v1221, %v1581
      %v1586 = vmul.f32 %v1223, %v1581
      %v1587 = vmul.f32 %v1225, %v1581
      %v1588 = vmul.f32 %v1227, %v1581
      %v1589 = vmul.f32 %v1229, %v1581
      %v1590 = vadd.f32 %v1570, %v1582
      %v1591 = vadd.f32 %v1571, %v1583
      %v1592 = vadd.f32 %v1572, %v1584
      %v1593 = vadd.f32 %v1573, %v1585
      %v1594 = vadd.f32 %v1574, %v1586
      %v1595 = vadd.f32 %v1575, %v1587
      %v1596 = vadd.f32 %v1576, %v1588
      %v1597 = vadd.f32 %v1577, %v1589
      %v1598 = vlaneseq
      %v1599 = vshrl.u32 %v1598, 7
      %v1600 = vsub.s32 1, %v1599
      %v1601 = vrot.slane %v1233, %v1600
      %v1602 = vmul.f32 %v1215, %v1601
      %v1603 = vmul.f32 %v1216, %v1601
      %v1604 = vmul.f32 %v1217, %v1601
      %v1605 = vmul.f32 %v1218, %v1601
      %v1606 = vmul.f32 %v1219, %v1601
      %v1607 = vmul.f32 %v1220, %v1601
      %v1608 = vmul.f32 %v1221, %v1601
      %v1609 = vmul.f32 %v1222, %v1601
      %v1610 = vmul.f32 %v1223, %v1601
      %v1611 = vmul.f32 %v1224, %v1601
      %v1612 = vmul.f32 %v1225, %v1601
      %v1613 = vmul.f32 %v1226, %v1601
      %v1614 = vmul.f32 %v1227, %v1601
      %v1615 = vmul.f32 %v1228, %v1601
      %v1616 = vmul.f32 %v1229, %v1601
      %v1617 = vmul.f32 %v1230, %v1601
      %v1634 = vrot.slane %v1602, 1
      %v1635 = vrot.slane %v1603, 1
      %v1636 = vsel %vm596, %v1634, %v1635
      %v1637 = vrot.slane %v1604, 1
      %v1638 = vrot.slane %v1605, 1
      %v1639 = vsel %vm596, %v1637, %v1638
      %v1640 = vrot.slane %v1606, 1
      %v1641 = vrot.slane %v1607, 1
      %v1642 = vsel %vm596, %v1640, %v1641
      %v1643 = vrot.slane %v1608, 1
      %v1644 = vrot.slane %v1609, 1
      %v1645 = vsel %vm596, %v1643, %v1644
      %v1646 = vrot.slane %v1610, 1
      %v1647 = vrot.slane %v1611, 1
      %v1648 = vsel %vm596, %v1646, %v1647
      %v1649 = vrot.slane %v1612, 1
      %v1650 = vrot.slane %v1613, 1
      %v1651 = vsel %vm596, %v1649, %v1650
      %v1652 = vrot.slane %v1614, 1
      %v1653 = vrot.slane %v1615, 1
      %v1654 = vsel %vm596, %v1652, %v1653
      %v1655 = vrot.slane %v1616, 1
      %v1656 = vrot.slane %v1617, 1
      %v1657 = vsel %vm596, %v1655, %v1656
      %v1666 = vadd.f32 %v1590, %v1636
      %v1667 = vadd.f32 %v1591, %v1639
      %v1668 = vadd.f32 %v1592, %v1642
      %v1669 = vadd.f32 %v1593, %v1645
      %v1670 = vadd.f32 %v1594, %v1648
      %v1671 = vadd.f32 %v1595, %v1651
      %v1672 = vadd.f32 %v1596, %v1654
      %v1673 = vadd.f32 %v1597, %v1657
      %v1674 = vlaneseq
      %v1675 = vshrl.u32 %v1674, 7
      %v1676 = vsub.s32 2, %v1675
      %v1677 = vrot.slane %v1233, %v1676
      %v1678 = vmul.f32 %v1215, %v1677
      %v1679 = vmul.f32 %v1216, %v1677
      %v1680 = vmul.f32 %v1217, %v1677
      %v1681 = vmul.f32 %v1218, %v1677
      %v1682 = vmul.f32 %v1219, %v1677
      %v1683 = vmul.f32 %v1220, %v1677
      %v1684 = vmul.f32 %v1221, %v1677
      %v1685 = vmul.f32 %v1222, %v1677
      %v1686 = vmul.f32 %v1223, %v1677
      %v1687 = vmul.f32 %v1224, %v1677
      %v1688 = vmul.f32 %v1225, %v1677
      %v1689 = vmul.f32 %v1226, %v1677
      %v1690 = vmul.f32 %v1227, %v1677
      %v1691 = vmul.f32 %v1228, %v1677
      %v1692 = vmul.f32 %v1229, %v1677
      %v1693 = vmul.f32 %v1230, %v1677
      %v1710 = vrot.slane %v1678, 2
      %v1711 = vrot.slane %v1679, 2
      %v1712 = vsel %vm673, %v1710, %v1711
      %v1713 = vrot.slane %v1680, 2
      %v1714 = vrot.slane %v1681, 2
      %v1715 = vsel %vm673, %v1713, %v1714
      %v1716 = vrot.slane %v1682, 2
      %v1717 = vrot.slane %v1683, 2
      %v1718 = vsel %vm673, %v1716, %v1717
      %v1719 = vrot.slane %v1684, 2
      %v1720 = vrot.slane %v1685, 2
      %v1721 = vsel %vm673, %v1719, %v1720
      %v1722 = vrot.slane %v1686, 2
      %v1723 = vrot.slane %v1687, 2
      %v1724 = vsel %vm673, %v1722, %v1723
      %v1725 = vrot.slane %v1688, 2
      %v1726 = vrot.slane %v1689, 2
      %v1727 = vsel %vm673, %v1725, %v1726
      %v1728 = vrot.slane %v1690, 2
      %v1729 = vrot.slane %v1691, 2
      %v1730 = vsel %vm673, %v1728, %v1729
      %v1731 = vrot.slane %v1692, 2
      %v1732 = vrot.slane %v1693, 2
      %v1733 = vsel %vm673, %v1731, %v1732
      %v1742 = vadd.f32 %v1666, %v1712
      %v1743 = vadd.f32 %v1667, %v1715
      %v1744 = vadd.f32 %v1668, %v1718
      %v1745 = vadd.f32 %v1669, %v1721
      %v1746 = vadd.f32 %v1670, %v1724
      %v1747 = vadd.f32 %v1671, %v1727
      %v1748 = vadd.f32 %v1672, %v1730
      %v1749 = vadd.f32 %v1673, %v1733
      %v1750 = vld [vmem:[%s7] sm:$0xff]
      %v1751 = vld [vmem:[%s8] sm:$0xff]
      %1753 = vset.pattern.permute.xlu0 0
      %1754 = vperm.xlu0 %1753, %v1751
      %v1755 = vpop.permute.xlu0 %1754
      %v1758 = vsel %vm486, %v1750, 0
      %v1761 = vsel %vm486, %v1742, 0
      %v1764 = vsel %vm486, %v1743, 0
      %v1767 = vsel %vm486, %v1744, 0
      %v1770 = vsel %vm486, %v1745, 0
      %v1773 = vsel %vm486, %v1746, 0
      %v1776 = vsel %vm486, %v1747, 0
      %v1779 = vsel %vm486, %v1748, 0
      %v1782 = vsel %vm486, %v1749, 0
      %1784 = vmatprep.subr.mxu0 0.0
      %1785 = vmatpush1.xpose.msra.mxu0 %v1761
      %1786 = vmatprep.subr.mxu0 0.0
      %1787 = vmatpush1.xpose.msra.mxu0 %v1764
      %1788 = vmatprep.subr.mxu0 0.0
      %1789 = vmatpush1.xpose.msra.mxu0 %v1767
      %1790 = vmatprep.subr.mxu0 0.0
      %1791 = vmatpush1.xpose.msra.mxu0 %v1770
      %1792 = vmatprep.subr.mxu0 0.0
      %1793 = vmatpush1.xpose.msra.mxu0 %v1773
      %1794 = vmatprep.subr.mxu0 0.0
      %1795 = vmatpush1.xpose.msra.mxu0 %v1776
      %1796 = vmatprep.subr.mxu0 0.0
      %1797 = vmatpush1.xpose.msra.mxu0 %v1779
      %1798 = vmatprep.subr.mxu0 0.0
      %1799 = vmatpush1.xpose.msra.mxu0 %v1782
      %1800 = vmatprep.subr.mxu0 0.0
      %1801 = vmatpush1.xpose.msra.mxu0 0.0
      %1802 = vmatprep.subr.mxu0 0.0
      %1803 = vmatpush1.xpose.msra.mxu0 0.0
      %1804 = vmatprep.subr.mxu0 0.0
      %1805 = vmatpush1.xpose.msra.mxu0 0.0
      %1806 = vmatprep.subr.mxu0 0.0
      %1807 = vmatpush1.xpose.msra.mxu0 0.0
      %1808 = vmatprep.subr.mxu0 0.0
      %1809 = vmatpush1.xpose.msra.mxu0 0.0
      %1810 = vmatprep.subr.mxu0 0.0
      %1811 = vmatpush1.xpose.msra.mxu0 0.0
      %1812 = vmatprep.subr.mxu0 0.0
      %1813 = vmatpush1.xpose.msra.mxu0 0.0
      %1814 = vmatprep.subr.mxu0 0.0
      %1815 = vmatpush1.xpose.msra.mxu0 0.0
      %1816 = vmatprep.subr.mxu0 0.0
      %1817 = vmatpush1.xpose.msra.mxu0 0.0
      %1818 = vmatprep.subr.mxu0 0.0
      %1819 = vmatpush1.xpose.msra.mxu0 0.0
      %1820 = vmatprep.subr.mxu0 0.0
      %1821 = vmatpush1.xpose.msra.mxu0 0.0
      %1822 = vmatprep.subr.mxu0 0.0
      %1823 = vmatpush1.xpose.msra.mxu0 0.0
      %1824 = vmatprep.subr.mxu0 0.0
      %1825 = vmatpush1.xpose.msra.mxu0 0.0
      %1826 = vmatprep.subr.mxu0 0.0
      %1827 = vmatpush1.xpose.msra.mxu0 0.0
      %1828 = vmatprep.subr.mxu0 0.0
      %1829 = vmatpush1.xpose.msra.mxu0 0.0
      %1830 = vmatprep.subr.mxu0 0.0
      %1831 = vmatpush1.xpose.msra.mxu0 0.0
      %1832 = vmatprep.subr.mxu0 0.0
      %1833 = vmatpush1.xpose.msra.mxu0 0.0
      %1834 = vmatprep.subr.mxu0 0.0
      %1835 = vmatpush1.xpose.msra.mxu0 0.0
      %1836 = vmatprep.subr.mxu0 0.0
      %1837 = vmatpush1.xpose.msra.mxu0 0.0
      %1838 = vmatprep.subr.mxu0 0.0
      %1839 = vmatpush1.xpose.msra.mxu0 0.0
      %1840 = vmatprep.subr.mxu0 0.0
      %1841 = vmatpush1.xpose.msra.mxu0 0.0
      %1842 = vmatprep.subr.mxu0 0.0
      %1843 = vmatpush1.xpose.msra.mxu0 0.0
      %1844 = vmatprep.subr.mxu0 0.0
      %1845 = vmatpush1.xpose.msra.mxu0 0.0
      %1846 = vmatprep.subr.mxu0 0.0
      %1847 = vmatpush1.xpose.msra.mxu0 0.0
      %1848 = vmatprep.mubr.f32.mxu0 0.0
      %1849 = vmatmul.mubr.f32.gmra.mrb[0].mxu0 %v1758
      %v1850 = vpop.f32.mrb[0].mxu0
      %v1851 = vadd.f32 %v1755, %v1850
      %v1852 = vpop.f32.mrb[0].mxu0
      %1853 = vdwg.mxu0
      %v1854 = vmax.f32 %v1851, 0.0
      %vm1855 = vcmask 523264
      %1856 = vst.msk [vmem:[%s330] sm:$0xff] %vm1855, %v1854
      %p1857 = scmp.lt.s32.totalorder %s20, 1
      %s1858 = scalar_select %p1857, %s20, 1
      %s1859 = smul.addr %s1858, 8
      %s1860 = scalar_lea.vmem %s9, %s1859
      // Predicated region
      $region57: #{down_forward.1} parent=55 // pred_check
        %p1861 = pneg %p232
      $region58: #{down_forward.1} parent=55 // pred_check_branch
        %1863 = sbr.rel (%p1861) target = $region60
      $region59: #{down_forward.1} parent=55 // pred_region
        _
      $region60: #{down_forward.1} parent=55 // pred_fallthru
        _
    $region56: #{down_forward.1} parent=5 // pred_fallthru
      _
    %p1864 = scmp.le.s32.totalorder 2, %s15
    // Predicated region
    $region61: #{down_forward.1} parent=5 // pred_check
      %p1865 = pneg %p1864
    $region62: #{down_forward.1} parent=5 // pred_check_branch
      %1867 = sbr.rel (%p1865) target = $region64
    $region63: #{down_forward.1} parent=5 // pred_region
      %s1868 = ssub.s32 %s15, 2
      // Predicated region
      $region65: #{down_forward.1} parent=63 // pred_check
        %p1869 = pneg %p238
      $region66: #{down_forward.1} parent=63 // pred_check_branch
        %1871 = sbr.rel (%p1869) target = $region68
      $region67: #{down_forward.1} parent=63 // pred_region
        %p1872 = scmp.lt.s32.totalorder %s21, 1
        %s1873 = scalar_select %p1872, %s21, 1
        %s1874 = smul.addr %s1873, 8
        %s1875 = scalar_lea.vmem %s9, %s1874
      $region68: #{down_forward.1} parent=63 // pred_fallthru
        _
    $region64: #{down_forward.1} parent=5 // pred_fallthru
      _
  $region6: #{down_forward.1} parent=0 // loop_footer
    %s19 = sadd.s32 1, %s15
  $region7: #{down_forward.1} parent=0 // loop_footer_branch
    %14 = sbr.rel target = $region3
  $region8: #{down_forward.1} parent=0 // loop_exit
    _

</llo_original>
